<compile_context>
chip_gen: v7x
topology: tpu7x:2x2x1
jax: 0.10.0
libtpu: 0.0.40
codegen_flags: <defaults>
</compile_context>

<pallas_src>
import functools

import jax
import jax.numpy as jnp
from jax.experimental import pallas as pl
from jax.experimental.pallas import tpu as pltpu


# ---------------------------------------------------------------------------
# Helpers mirroring the PyTorch module's channel arithmetic.
# ---------------------------------------------------------------------------
def _make_divisible(v, divisor=8, min_value=None):
    if min_value is None:
        min_value = divisor
    new_v = max(min_value, int(v + divisor / 2) // divisor * divisor)
    if new_v < 0.9 * v:
        new_v += divisor
    return new_v


def _adjust_channels(channels, factor):
    return _make_divisible(channels * factor, 8)


def _round_up(v, m):
    return (v + m - 1) // m * m


def _sigmoid_approx(z):
    # exp rides the EUP; approx reciprocal also rides the EUP slot instead of a VALU
    # f32 divide.  The clamp guards exp(-z) against overflow for strongly negative
    # pre-activations (sigmoid(z) ~ 0 there anyway).
    return pl.reciprocal(1.0 + jnp.exp(-jnp.maximum(z, -30.0)), approx=True)


def _sigmoid_exact(z):
    # SE gate only ((Cmid, 1) values that scale the entire feature map): exact divide,
    # negligible cost at this size, avoids amplifying the approx-reciprocal error.
    return 1.0 / (1.0 + jnp.exp(-jnp.maximum(z, -30.0)))


# ---------------------------------------------------------------------------
# Pallas kernel: B_blk batch images per (parallel) grid step.
#   x_ref    : (B_blk, Cin8, Lin)      flattened zero-padded images (f32)
#   o_ref    : (B_blk, Cout, Lw)       lane-dense flat outputs
#   cols_ref : (K*K*Cin8, B_blk*Lw)    bf16 im2col scratch (8/128-aligned tap stores)
#   yg_ref   : (Cmid, B_blk*Lw)        bf16 gated-activation scratch (projection input)
# ---------------------------------------------------------------------------
def _mbconv_kernel(x_ref,
                   w1t_ref, w2t_ref, sew1t_ref, sew2t_ref,
                   bias_ref, pool_ref,
                   o_ref,
                   cols_ref, yg_ref,
                   *, k, wp, lw, pad, use_res, b_blk,
                   c_mid, c_sq, c_out,
                   off_b1, off_seb1, off_seb2, off_b2):
    c_in8 = x_ref.shape[1]

    # ---- in-kernel im2col: per image, K*K constant-offset lane windows of the
    # flattened padded image -> bf16 VMEM scratch.  Sublane starts are multiples of 8
    # (Cin padded to Cin8 in the wrapper) and lane starts are multiples of 128
    # (Lw is 128-aligned), so every store is unmasked.
    for b in range(b_blk):
        xf = x_ref[b]                                        # (Cin8, Lin), f32
        for kh in range(k):
            for kw in range(k):
                t = kh * k + kw
                d = kh * wp + kw                             # tap's flat lane offset
                cols_ref[t * c_in8:(t + 1) * c_in8, b * lw:(b + 1) * lw] = (
                    xf[:, d:d + lw].astype(cols_ref.dtype))

    bias = bias_ref[...]                                     # (Bpad, 1) f32
    b1 = bias[off_b1:off_b1 + c_mid]
    seb1 = bias[off_seb1:off_seb1 + c_sq]
    seb2 = bias[off_seb2:off_seb2 + c_mid]
    b2 = bias[off_b2:off_b2 + c_out]

    # ---- expand conv: ONE bf16 MXU matmul over N = B_blk*Lw with the whole
    # (kh, kw, cin) contraction folded together; BN1 scale pre-folded into w1t.
    y = jnp.dot(w1t_ref[...], cols_ref[...],
                preferred_element_type=jnp.float32)          # (Cmid, B*Lw) f32 acc
    y = y + b1                                               # folded BatchNorm 1 bias
    y = y * _sigmoid_approx(y)                               # SiLU

    # ---- Squeeze-Excitation, per image (pool only over valid conv-output lanes).
    for b in range(b_blk):
        y_seg = y[:, b * lw:(b + 1) * lw]                    # lane-aligned slice
        pooled = jnp.sum(y_seg * pool_ref[...], axis=1, keepdims=True)     # (Cmid, 1)
        a = jnp.maximum(
            jnp.dot(sew1t_ref[...], pooled, preferred_element_type=jnp.float32)
            + seb1, 0.0)                                     # (Csq, 1)
        z = jnp.dot(sew2t_ref[...], a, preferred_element_type=jnp.float32) + seb2
        gate = _sigmoid_exact(z)                             # (Cmid, 1)
        yg_ref[:, b * lw:(b + 1) * lw] = (y_seg * gate).astype(yg_ref.dtype)

    # ---- 1x1 projection (BN2 scale folded into w2t), single bf16 MXU matmul.
    o = jnp.dot(w2t_ref[...], yg_ref[...],
                preferred_element_type=jnp.float32)          # (Cout, B*Lw) f32
    o = o + b2                                               # folded BatchNorm 2 bias

    dres = pad * wp + pad                                    # residual lane offset
    for b in range(b_blk):
        o_b = o[:, b * lw:(b + 1) * lw]
        if use_res:
            # Residual from the interior of the padded f32 input: output flat
            # position q maps to input flat position q + pad*(Wp+1)  (stride==1,
            # Cin==Cout asserted in the wrapper).
            o_b = o_b + x_ref[b][0:c_out, dres:dres + lw].astype(jnp.float32)
        o_ref[b] = o_b.astype(o_ref.dtype)                   # lane-dense store


# ---------------------------------------------------------------------------
# Wrapper: layout plumbing (padding, flattening, weight/BN folding) around the
# pallas_call; no per-element compute is hoisted out of the kernel.
# ---------------------------------------------------------------------------
def convolution_operation_v2(x_nchw, params, *, kernel_size, stride, use_res,
                             b_blk=None):
    (w1, s1, b1, sew1, seb1, sew2, seb2, w2, s2, b2) = params
    n, c_in, h, w = x_nchw.shape
    k = kernel_size
    pad = k // 2
    h_out = (h + 2 * pad - k) // stride + 1
    w_out = (w + 2 * pad - k) // stride + 1
    hp, wp = h + 2 * pad, w + 2 * pad
    c_mid = w1.shape[-1]
    c_sq = sew1.shape[-1]
    c_out = w2.shape[-1]
    c_in8 = _round_up(c_in, 8)

    if use_res:
        assert stride == 1 and c_in == c_out, "residual requires stride==1, Cin==Cout"

    # Images per grid step: fewer, fatter steps amortize per-step pipeline overhead
    # and widen the MXU N-dimension.  (On v7x, keep grid extent >= 2 if both
    # TensorCores should be fed; batch is the only parallel axis here.)
    if b_blk is None:
        b_blk = max(1, min(n, 4))
    n_pad = _round_up(n, b_blk)

    # Flattened padded spatial axis; working window rounded up to a multiple of 128
    # so all matmul N-dims and output stores are lane-dense.
    lw = _round_up(hp * wp, 128)                 # in-kernel working length (lanes)
    dmax = (k - 1) * wp + (k - 1)                # largest conv-tap lane offset
    lin = dmax + lw                              # input flat length so all taps fit
    # TODO(synk): for stride > 1, build im2col columns only at strided output
    # positions (Lw_out = round_up(h_out*w_out, 128)) to avoid ~stride^2 extra work.

    x_pad = jnp.pad(x_nchw, ((0, n_pad - n), (0, c_in8 - c_in),
                             (pad, pad), (pad, pad)))
    x_flat = x_pad.reshape(n_pad, c_in8, hp * wp)
    x_flat = jnp.pad(x_flat, ((0, 0), (0, 0), (0, lin - hp * wp)))

    # ---- parameter folding (weight-sized arrays only; negligible wrapper cost).
    # BN scales folded into the conv weights; weights cast to bf16 so both MXU
    # operands are bf16 (f32 accumulation via preferred_element_type).
    w1p = jnp.pad(w1, ((0, 0), (0, 0), (0, c_in8 - c_in), (0, 0)))  # zero pad-channels
    w1t = jnp.transpose(
        w1p.reshape(k * k * c_in8, c_mid) * s1[None, :]).astype(jnp.bfloat16)
    w2t = jnp.transpose(w2 * s2[None, :]).astype(jnp.bfloat16)       # (Cout, Cmid)
    sew1t = jnp.transpose(sew1).astype(jnp.float32)                  # (Csq, Cmid)
    sew2t = jnp.transpose(sew2).astype(jnp.float32)                  # (Cmid, Csq)

    # Pack the four bias vectors into one operand (8-aligned row segments).
    off_b1 = 0
    off_seb1 = off_b1 + _round_up(c_mid, 8)
    off_seb2 = off_seb1 + _round_up(c_sq, 8)
    off_b2 = off_seb2 + _round_up(c_mid, 8)
    n_bias = off_b2 + _round_up(c_out, 8)

    def _seg(v):
        return jnp.pad(v.astype(jnp.float32),
                       (0, _round_up(v.shape[0], 8) - v.shape[0]))

    biases = jnp.concatenate([_seg(b1), _seg(seb1), _seg(seb2), _seg(b2)]
                             ).reshape(n_bias, 1)

    # Pooling vector: 1/(Ho*Wo) at flat positions that carry a real (strided) conv
    # output, 0 at padding / skipped positions.
    q = jnp.arange(lw)
    r, c = q // wp, q % wp
    valid = ((q < hp * wp)
             & (r % stride == 0) & (r // stride < h_out)
             & (c % stride == 0) & (c // stride < w_out))
    pool_vec = (valid.astype(jnp.float32) / float(h_out * w_out)).reshape(1, lw)

    kern = functools.partial(
        _mbconv_kernel, k=k, wp=wp, lw=lw, pad=pad, use_res=use_res, b_blk=b_blk,
        c_mid=c_mid, c_sq=c_sq, c_out=c_out,
        off_b1=off_b1, off_seb1=off_seb1, off_seb2=off_seb2, off_b2=off_b2)

    def _full(arr):
        nd = arr.ndim
        return pl.BlockSpec(arr.shape, lambda i, _nd=nd: (0,) * _nd)

    out_flat = pl.pallas_call(
        kern,
        out_shape=jax.ShapeDtypeStruct((n_pad, c_out, lw), x_nchw.dtype),
        grid_spec=pltpu.PrefetchScalarGridSpec(
            num_scalar_prefetch=0,
            grid=(n_pad // b_blk,),
            in_specs=[
                pl.BlockSpec((b_blk, c_in8, lin), lambda i: (i, 0, 0)),
                _full(w1t), _full(w2t), _full(sew1t), _full(sew2t),
                _full(biases), _full(pool_vec),
            ],
            out_specs=pl.BlockSpec((b_blk, c_out, lw), lambda i: (i, 0, 0)),
            scratch_shapes=[
                pltpu.VMEM((k * k * c_in8, b_blk * lw), jnp.bfloat16),  # im2col
                pltpu.VMEM((c_mid, b_blk * lw), jnp.bfloat16),          # gated acts
            ],
        ),
        compiler_params=pltpu.CompilerParams(
            dimension_semantics=("parallel",),
            vmem_limit_bytes=32 * 1024 * 1024),
    )(x_flat, w1t, w2t, sew1t, sew2t, biases, pool_vec)

    # Extract the valid (strided) output window: pure XLA slicing / metadata reshape,
    # output is already in NCHW channel order so no transpose is needed.
    out = out_flat[:n, :, :hp * wp].reshape(n, c_out, hp, wp)
    out = out[:, :, 0:(h_out - 1) * stride + 1:stride,
              0:(w_out - 1) * stride + 1:stride]
    return out


# ---------------------------------------------------------------------------
# Deterministic parameter construction + pure-JAX reference for sanity check.
# ---------------------------------------------------------------------------
def make_params(key, in_chn, out_chn, kernel_size, expand_ratio):
    mid_chn = _adjust_channels(in_chn, expand_ratio)
    # TODO(synk): SE squeeze width assumed as mid_chn // expand_ratio; EfficientNet's
    # SqueezeExcitation usually squeezes relative to the *input* channels.
    sq_chn = max(1, mid_chn // expand_ratio)
    ks = jax.random.split(key, 4)
    eps = 1e-5

    w1 = jax.random.normal(ks[0], (kernel_size, kernel_size, in_chn, mid_chn),
                           jnp.float32) * 0.1
    # BN1 (inference fold): gamma=1, beta=0, mean=0, var=1
    s1 = jnp.full((mid_chn,), 1.0 / jnp.sqrt(1.0 + eps), jnp.float32)
    b1 = jnp.zeros((mid_chn,), jnp.float32)

    sew1 = jax.random.normal(ks[1], (mid_chn, sq_chn), jnp.float32) * 0.1
    seb1 = jnp.zeros((sq_chn,), jnp.float32)
    sew2 = jax.random.normal(ks[2], (sq_chn, mid_chn), jnp.float32) * 0.1
    seb2 = jnp.zeros((mid_chn,), jnp.float32)

    w2 = jax.random.normal(ks[3], (mid_chn, out_chn), jnp.float32) * 0.1
    s2 = jnp.full((out_chn,), 1.0 / jnp.sqrt(1.0 + eps), jnp.float32)
    b2 = jnp.zeros((out_chn,), jnp.float32)

    return (w1, s1, b1, sew1, seb1, sew2, seb2, w2, s2, b2)


def reference(x_nchw, params, *, kernel_size, stride, use_res):
    (w1, s1, b1, sew1, seb1, sew2, seb2, w2, s2, b2) = params
    pad = kernel_size // 2
    y = jax.lax.conv_general_dilated(
        x_nchw, w1, (stride, stride), [(pad, pad), (pad, pad)],
        dimension_numbers=("NCHW", "HWIO", "NCHW"))
    y = y * s1[None, :, None, None] + b1[None, :, None, None]
    y = y * jax.nn.sigmoid(y)
    pooled = jnp.mean(y, axis=(2, 3))                       # (N, Cmid)
    a = jnp.maximum(pooled @ sew1 + seb1[None, :], 0.0)
    gate = jax.nn.sigmoid(a @ sew2 + seb2[None, :])
    y = y * gate[:, :, None, None]
    o = jnp.einsum("nchw,cd->ndhw", y, w2)
    o = o * s2[None, :, None, None] + b2[None, :, None, None]
    if use_res:
        o = o + x_nchw
    return o


if __name__ == "__main__":
    # Small config consistent with the module: expand_ratio=4, in=out=4, k=3, stride=1
    expand_ratio, in_chn, out_chn, kernel_size, stride = 4, 4, 4, 3, 1
    use_res = (in_chn == out_chn) and (stride == 1)

    key = jax.random.PRNGKey(0)
    kx, kp = jax.random.split(key)
    x = jax.random.normal(kx, (2, in_chn, 16, 16), jnp.float32)   # NCHW
    params = make_params(kp, in_chn, out_chn, kernel_size, expand_ratio)

    out = convolution_operation_v2(x, params, kernel_size=kernel_size,
                                   stride=stride, use_res=use_res)
    out = jax.block_until_ready(out)

    ref = reference(x, params, kernel_size=kernel_size, stride=stride,
                    use_res=use_res)
    assert out.shape == ref.shape
    # Tolerance 2e-2: the kernel's expand/project matmuls run on bf16 MXU operands
    # (f32 accumulation) and the SiLU uses the EUP approximate reciprocal.
    assert jnp.allclose(out, ref, atol=2e-2, rtol=2e-2), "mismatch vs JAX reference"

    print("KERNEL_OK")
</pallas_src>

<mosaic_0001>
module attributes {stable_mosaic.version = 11 : i64} {
  func.func @_mbconv_kernel(%arg0: i32, %arg1: memref<2x8x422xf32, #tpu.memory_space<vmem>>, %arg2: memref<16x72xbf16, #tpu.memory_space<vmem>>, %arg3: memref<4x16xbf16, #tpu.memory_space<vmem>>, %arg4: memref<4x16xf32, #tpu.memory_space<vmem>>, %arg5: memref<16x4xf32, #tpu.memory_space<vmem>>, %arg6: memref<48x1xf32, #tpu.memory_space<vmem>>, %arg7: memref<1x384xf32, #tpu.memory_space<vmem>>, %arg8: memref<2x4x384xf32, #tpu.memory_space<vmem>>, %arg9: memref<72x768xbf16, #tpu.memory_space<vmem>>, %arg10: memref<16x768xbf16, #tpu.memory_space<vmem>>) attributes {dimension_semantics = [#tpu.dimension_semantics<parallel>], iteration_bounds = array<i64: 1>, scalar_prefetch = 0 : i64, scratch_operands = 2 : i64, tpu.core_type = #tpu.core_type<tc>, window_params = [{transform_indices = @transform_0, window_bounds = array<i64: 2, 8, 422>}, {pipeline_mode = #tpu.pipeline_mode<synchronous>, transform_indices = @transform_1, window_bounds = array<i64: 16, 72>}, {pipeline_mode = #tpu.pipeline_mode<synchronous>, transform_indices = @transform_2, window_bounds = array<i64: 4, 16>}, {pipeline_mode = #tpu.pipeline_mode<synchronous>, transform_indices = @transform_3, window_bounds = array<i64: 4, 16>}, {pipeline_mode = #tpu.pipeline_mode<synchronous>, transform_indices = @transform_4, window_bounds = array<i64: 16, 4>}, {pipeline_mode = #tpu.pipeline_mode<synchronous>, transform_indices = @transform_5, window_bounds = array<i64: 48, 1>}, {pipeline_mode = #tpu.pipeline_mode<synchronous>, transform_indices = @transform_6, window_bounds = array<i64: 1, 384>}, {transform_indices = @transform_7, window_bounds = array<i64: 2, 4, 384>}]} {
    %c0 = arith.constant 0 : index
    %c0_0 = arith.constant 0 : index
    %c0_1 = arith.constant 0 : index
    %0 = vector.load %arg1[%c0, %c0_0, %c0_1] : memref<2x8x422xf32, #tpu.memory_space<vmem>>, vector<1x8x422xf32>
    %1 = vector.shape_cast %0 : vector<1x8x422xf32> to vector<8x422xf32>
    %2 = vector.extract_strided_slice %1 {offsets = [0, 0], sizes = [8, 384], strides = [1, 1]} : vector<8x422xf32> to vector<8x384xf32>
    %3 = arith.truncf %2 : vector<8x384xf32> to vector<8x384xbf16>
    %c0_2 = arith.constant 0 : index
    %c0_3 = arith.constant 0 : index
    %4 = vector.load %arg9[%c0_2, %c0_3] : memref<72x768xbf16, #tpu.memory_space<vmem>>, vector<8x384xbf16>
    tpu.vector_store %arg9[%c0_2, %c0_3], %3 {strides = array<i32>} : memref<72x768xbf16, #tpu.memory_space<vmem>>, vector<8x384xbf16>,
    %5 = vector.extract_strided_slice %1 {offsets = [0, 1], sizes = [8, 384], strides = [1, 1]} : vector<8x422xf32> to vector<8x384xf32>
    %6 = arith.truncf %5 : vector<8x384xf32> to vector<8x384xbf16>
    %c8 = arith.constant 8 : index
    %c0_4 = arith.constant 0 : index
    %7 = vector.load %arg9[%c8, %c0_4] : memref<72x768xbf16, #tpu.memory_space<vmem>>, vector<8x384xbf16>
    tpu.vector_store %arg9[%c8, %c0_4], %6 {strides = array<i32>} : memref<72x768xbf16, #tpu.memory_space<vmem>>, vector<8x384xbf16>,
    %8 = vector.extract_strided_slice %1 {offsets = [0, 2], sizes = [8, 384], strides = [1, 1]} : vector<8x422xf32> to vector<8x384xf32>
    %9 = arith.truncf %8 : vector<8x384xf32> to vector<8x384xbf16>
    %c16 = arith.constant 16 : index
    %c0_5 = arith.constant 0 : index
    %10 = vector.load %arg9[%c16, %c0_5] : memref<72x768xbf16, #tpu.memory_space<vmem>>, vector<8x384xbf16>
    tpu.vector_store %arg9[%c16, %c0_5], %9 {strides = array<i32>} : memref<72x768xbf16, #tpu.memory_space<vmem>>, vector<8x384xbf16>,
    %11 = vector.extract_strided_slice %1 {offsets = [0, 18], sizes = [8, 384], strides = [1, 1]} : vector<8x422xf32> to vector<8x384xf32>
    %12 = arith.truncf %11 : vector<8x384xf32> to vector<8x384xbf16>
    %c24 = arith.constant 24 : index
    %c0_6 = arith.constant 0 : index
    %13 = vector.load %arg9[%c24, %c0_6] : memref<72x768xbf16, #tpu.memory_space<vmem>>, vector<8x384xbf16>
    tpu.vector_store %arg9[%c24, %c0_6], %12 {strides = array<i32>} : memref<72x768xbf16, #tpu.memory_space<vmem>>, vector<8x384xbf16>,
    %14 = vector.extract_strided_slice %1 {offsets = [0, 19], sizes = [8, 384], strides = [1, 1]} : vector<8x422xf32> to vector<8x384xf32>
    %15 = arith.truncf %14 : vector<8x384xf32> to vector<8x384xbf16>
    %c32 = arith.constant 32 : index
    %c0_7 = arith.constant 0 : index
    %16 = vector.load %arg9[%c32, %c0_7] : memref<72x768xbf16, #tpu.memory_space<vmem>>, vector<8x384xbf16>
    tpu.vector_store %arg9[%c32, %c0_7], %15 {strides = array<i32>} : memref<72x768xbf16, #tpu.memory_space<vmem>>, vector<8x384xbf16>,
    %17 = vector.extract_strided_slice %1 {offsets = [0, 20], sizes = [8, 384], strides = [1, 1]} : vector<8x422xf32> to vector<8x384xf32>
    %18 = arith.truncf %17 : vector<8x384xf32> to vector<8x384xbf16>
    %c40 = arith.constant 40 : index
    %c0_8 = arith.constant 0 : index
    %19 = vector.load %arg9[%c40, %c0_8] : memref<72x768xbf16, #tpu.memory_space<vmem>>, vector<8x384xbf16>
    tpu.vector_store %arg9[%c40, %c0_8], %18 {strides = array<i32>} : memref<72x768xbf16, #tpu.memory_space<vmem>>, vector<8x384xbf16>,
    %20 = vector.extract_strided_slice %1 {offsets = [0, 36], sizes = [8, 384], strides = [1, 1]} : vector<8x422xf32> to vector<8x384xf32>
    %21 = arith.truncf %20 : vector<8x384xf32> to vector<8x384xbf16>
    %c48 = arith.constant 48 : index
    %c0_9 = arith.constant 0 : index
    %22 = vector.load %arg9[%c48, %c0_9] : memref<72x768xbf16, #tpu.memory_space<vmem>>, vector<8x384xbf16>
    tpu.vector_store %arg9[%c48, %c0_9], %21 {strides = array<i32>} : memref<72x768xbf16, #tpu.memory_space<vmem>>, vector<8x384xbf16>,
    %23 = vector.extract_strided_slice %1 {offsets = [0, 37], sizes = [8, 384], strides = [1, 1]} : vector<8x422xf32> to vector<8x384xf32>
    %24 = arith.truncf %23 : vector<8x384xf32> to vector<8x384xbf16>
    %c56 = arith.constant 56 : index
    %c0_10 = arith.constant 0 : index
    %25 = vector.load %arg9[%c56, %c0_10] : memref<72x768xbf16, #tpu.memory_space<vmem>>, vector<8x384xbf16>
    tpu.vector_store %arg9[%c56, %c0_10], %24 {strides = array<i32>} : memref<72x768xbf16, #tpu.memory_space<vmem>>, vector<8x384xbf16>,
    %26 = vector.extract_strided_slice %1 {offsets = [0, 38], sizes = [8, 384], strides = [1, 1]} : vector<8x422xf32> to vector<8x384xf32>
    %27 = arith.truncf %26 : vector<8x384xf32> to vector<8x384xbf16>
    %c64 = arith.constant 64 : index
    %c0_11 = arith.constant 0 : index
    %28 = vector.load %arg9[%c64, %c0_11] : memref<72x768xbf16, #tpu.memory_space<vmem>>, vector<8x384xbf16>
    tpu.vector_store %arg9[%c64, %c0_11], %27 {strides = array<i32>} : memref<72x768xbf16, #tpu.memory_space<vmem>>, vector<8x384xbf16>,
    %c1 = arith.constant 1 : index
    %c0_12 = arith.constant 0 : index
    %c0_13 = arith.constant 0 : index
    %29 = vector.load %arg1[%c1, %c0_12, %c0_13] : memref<2x8x422xf32, #tpu.memory_space<vmem>>, vector<1x8x422xf32>
    %30 = vector.shape_cast %29 : vector<1x8x422xf32> to vector<8x422xf32>
    %31 = vector.extract_strided_slice %30 {offsets = [0, 0], sizes = [8, 384], strides = [1, 1]} : vector<8x422xf32> to vector<8x384xf32>
    %32 = arith.truncf %31 : vector<8x384xf32> to vector<8x384xbf16>
    %c0_14 = arith.constant 0 : index
    %c384 = arith.constant 384 : index
    %33 = vector.load %arg9[%c0_14, %c384] : memref<72x768xbf16, #tpu.memory_space<vmem>>, vector<8x384xbf16>
    tpu.vector_store %arg9[%c0_14, %c384], %32 {strides = array<i32>} : memref<72x768xbf16, #tpu.memory_space<vmem>>, vector<8x384xbf16>,
    %34 = vector.extract_strided_slice %30 {offsets = [0, 1], sizes = [8, 384], strides = [1, 1]} : vector<8x422xf32> to vector<8x384xf32>
    %35 = arith.truncf %34 : vector<8x384xf32> to vector<8x384xbf16>
    %c8_15 = arith.constant 8 : index
    %c384_16 = arith.constant 384 : index
    %36 = vector.load %arg9[%c8_15, %c384_16] : memref<72x768xbf16, #tpu.memory_space<vmem>>, vector<8x384xbf16>
    tpu.vector_store %arg9[%c8_15, %c384_16], %35 {strides = array<i32>} : memref<72x768xbf16, #tpu.memory_space<vmem>>, vector<8x384xbf16>,
    %37 = vector.extract_strided_slice %30 {offsets = [0, 2], sizes = [8, 384], strides = [1, 1]} : vector<8x422xf32> to vector<8x384xf32>
    %38 = arith.truncf %37 : vector<8x384xf32> to vector<8x384xbf16>
    %c16_17 = arith.constant 16 : index
    %c384_18 = arith.constant 384 : index
    %39 = vector.load %arg9[%c16_17, %c384_18] : memref<72x768xbf16, #tpu.memory_space<vmem>>, vector<8x384xbf16>
    tpu.vector_store %arg9[%c16_17, %c384_18], %38 {strides = array<i32>} : memref<72x768xbf16, #tpu.memory_space<vmem>>, vector<8x384xbf16>,
    %40 = vector.extract_strided_slice %30 {offsets = [0, 18], sizes = [8, 384], strides = [1, 1]} : vector<8x422xf32> to vector<8x384xf32>
    %41 = arith.truncf %40 : vector<8x384xf32> to vector<8x384xbf16>
    %c24_19 = arith.constant 24 : index
    %c384_20 = arith.constant 384 : index
    %42 = vector.load %arg9[%c24_19, %c384_20] : memref<72x768xbf16, #tpu.memory_space<vmem>>, vector<8x384xbf16>
    tpu.vector_store %arg9[%c24_19, %c384_20], %41 {strides = array<i32>} : memref<72x768xbf16, #tpu.memory_space<vmem>>, vector<8x384xbf16>,
    %43 = vector.extract_strided_slice %30 {offsets = [0, 19], sizes = [8, 384], strides = [1, 1]} : vector<8x422xf32> to vector<8x384xf32>
    %44 = arith.truncf %43 : vector<8x384xf32> to vector<8x384xbf16>
    %c32_21 = arith.constant 32 : index
    %c384_22 = arith.constant 384 : index
    %45 = vector.load %arg9[%c32_21, %c384_22] : memref<72x768xbf16, #tpu.memory_space<vmem>>, vector<8x384xbf16>
    tpu.vector_store %arg9[%c32_21, %c384_22], %44 {strides = array<i32>} : memref<72x768xbf16, #tpu.memory_space<vmem>>, vector<8x384xbf16>,
    %46 = vector.extract_strided_slice %30 {offsets = [0, 20], sizes = [8, 384], strides = [1, 1]} : vector<8x422xf32> to vector<8x384xf32>
    %47 = arith.truncf %46 : vector<8x384xf32> to vector<8x384xbf16>
    %c40_23 = arith.constant 40 : index
    %c384_24 = arith.constant 384 : index
    %48 = vector.load %arg9[%c40_23, %c384_24] : memref<72x768xbf16, #tpu.memory_space<vmem>>, vector<8x384xbf16>
    tpu.vector_store %arg9[%c40_23, %c384_24], %47 {strides = array<i32>} : memref<72x768xbf16, #tpu.memory_space<vmem>>, vector<8x384xbf16>,
    %49 = vector.extract_strided_slice %30 {offsets = [0, 36], sizes = [8, 384], strides = [1, 1]} : vector<8x422xf32> to vector<8x384xf32>
    %50 = arith.truncf %49 : vector<8x384xf32> to vector<8x384xbf16>
    %c48_25 = arith.constant 48 : index
    %c384_26 = arith.constant 384 : index
    %51 = vector.load %arg9[%c48_25, %c384_26] : memref<72x768xbf16, #tpu.memory_space<vmem>>, vector<8x384xbf16>
    tpu.vector_store %arg9[%c48_25, %c384_26], %50 {strides = array<i32>} : memref<72x768xbf16, #tpu.memory_space<vmem>>, vector<8x384xbf16>,
    %52 = vector.extract_strided_slice %30 {offsets = [0, 37], sizes = [8, 384], strides = [1, 1]} : vector<8x422xf32> to vector<8x384xf32>
    %53 = arith.truncf %52 : vector<8x384xf32> to vector<8x384xbf16>
    %c56_27 = arith.constant 56 : index
    %c384_28 = arith.constant 384 : index
    %54 = vector.load %arg9[%c56_27, %c384_28] : memref<72x768xbf16, #tpu.memory_space<vmem>>, vector<8x384xbf16>
    tpu.vector_store %arg9[%c56_27, %c384_28], %53 {strides = array<i32>} : memref<72x768xbf16, #tpu.memory_space<vmem>>, vector<8x384xbf16>,
    %55 = vector.extract_strided_slice %30 {offsets = [0, 38], sizes = [8, 384], strides = [1, 1]} : vector<8x422xf32> to vector<8x384xf32>
    %56 = arith.truncf %55 : vector<8x384xf32> to vector<8x384xbf16>
    %c64_29 = arith.constant 64 : index
    %c384_30 = arith.constant 384 : index
    %57 = vector.load %arg9[%c64_29, %c384_30] : memref<72x768xbf16, #tpu.memory_space<vmem>>, vector<8x384xbf16>
    tpu.vector_store %arg9[%c64_29, %c384_30], %56 {strides = array<i32>} : memref<72x768xbf16, #tpu.memory_space<vmem>>, vector<8x384xbf16>,
    %c0_31 = arith.constant 0 : index
    %c0_32 = arith.constant 0 : index
    %58 = vector.load %arg6[%c0_31, %c0_32] : memref<48x1xf32, #tpu.memory_space<vmem>>, vector<48x1xf32>
    %59 = vector.extract_strided_slice %58 {offsets = [0, 0], sizes = [16, 1], strides = [1, 1]} : vector<48x1xf32> to vector<16x1xf32>
    %60 = vector.extract_strided_slice %58 {offsets = [16, 0], sizes = [4, 1], strides = [1, 1]} : vector<48x1xf32> to vector<4x1xf32>
    %61 = vector.extract_strided_slice %58 {offsets = [24, 0], sizes = [16, 1], strides = [1, 1]} : vector<48x1xf32> to vector<16x1xf32>
    %62 = vector.extract_strided_slice %58 {offsets = [40, 0], sizes = [4, 1], strides = [1, 1]} : vector<48x1xf32> to vector<4x1xf32>
    %c0_33 = arith.constant 0 : index
    %c0_34 = arith.constant 0 : index
    %63 = vector.load %arg2[%c0_33, %c0_34] : memref<16x72xbf16, #tpu.memory_space<vmem>>, vector<16x72xbf16>
    %c0_35 = arith.constant 0 : index
    %c0_36 = arith.constant 0 : index
    %64 = vector.load %arg9[%c0_35, %c0_36] : memref<72x768xbf16, #tpu.memory_space<vmem>>, vector<72x768xbf16>
    %cst = arith.constant dense<0.000000e+00> : vector<16x768xf32>
    %65 = tpu.matmul %63, %64, %cst {dimension_numbers = #tpu.dot_dimension_numbers<[1], [0], [0], [1], [0, 0, 1, 1], [], []>} : vector<16x72xbf16>, vector<72x768xbf16>, vector<16x768xf32> -> vector<16x768xf32>
    %66 = vector.broadcast %59 : vector<16x1xf32> to vector<16x768xf32>
    %67 = arith.addf %65, %66 : vector<16x768xf32>
    %cst_37 = arith.constant -3.000000e+01 : f32
    %68 = vector.broadcast %cst_37 : f32 to vector<16x768xf32>
    %69 = arith.maximumf %67, %68 : vector<16x768xf32>
    %cst_38 = arith.constant 0.000000e+00 : f32
    %70 = vector.broadcast %cst_38 : f32 to vector<16x768xf32>
    %71 = arith.subf %70, %69 : vector<16x768xf32>
    %72 = math.exp %71 : vector<16x768xf32>
    %cst_39 = arith.constant 1.000000e+00 : f32
    %73 = vector.broadcast %cst_39 : f32 to vector<16x768xf32>
    %74 = arith.addf %73, %72 : vector<16x768xf32>
    %75 = tpu.reciprocal %74 {approx = true} : vector<16x768xf32> -> vector<16x768xf32>
    %76 = arith.mulf %67, %75 : vector<16x768xf32>
    %77 = vector.extract_strided_slice %76 {offsets = [0, 0], sizes = [16, 384], strides = [1, 1]} : vector<16x768xf32> to vector<16x384xf32>
    %c0_40 = arith.constant 0 : index
    %c0_41 = arith.constant 0 : index
    %78 = vector.load %arg7[%c0_40, %c0_41] : memref<1x384xf32, #tpu.memory_space<vmem>>, vector<1x384xf32>
    %79 = vector.broadcast %78 : vector<1x384xf32> to vector<16x384xf32>
    %80 = arith.mulf %77, %79 : vector<16x384xf32>
    %cst_42 = arith.constant dense<0.000000e+00> : vector<16xf32>
    %81 = vector.multi_reduction <add>, %80, %cst_42 [1] : vector<16x384xf32> to vector<16xf32>
    %82 = vector.shape_cast %81 : vector<16xf32> to vector<16x1xf32>
    %c0_43 = arith.constant 0 : index
    %c0_44 = arith.constant 0 : index
    %83 = vector.load %arg4[%c0_43, %c0_44] : memref<4x16xf32, #tpu.memory_space<vmem>>, vector<4x16xf32>
    %cst_45 = arith.constant dense<0.000000e+00> : vector<4x1xf32>
    %84 = tpu.matmul %83, %82, %cst_45 {dimension_numbers = #tpu.dot_dimension_numbers<[1], [0], [0], [1], [0, 0, 1, 1], [], []>} : vector<4x16xf32>, vector<16x1xf32>, vector<4x1xf32> -> vector<4x1xf32>
    %85 = arith.addf %84, %60 : vector<4x1xf32>
    %cst_46 = arith.constant 0.000000e+00 : f32
    %86 = vector.broadcast %cst_46 : f32 to vector<4x1xf32>
    %87 = arith.maximumf %85, %86 : vector<4x1xf32>
    %c0_47 = arith.constant 0 : index
    %c0_48 = arith.constant 0 : index
    %88 = vector.load %arg5[%c0_47, %c0_48] : memref<16x4xf32, #tpu.memory_space<vmem>>, vector<16x4xf32>
    %cst_49 = arith.constant dense<0.000000e+00> : vector<16x1xf32>
    %89 = tpu.matmul %88, %87, %cst_49 {dimension_numbers = #tpu.dot_dimension_numbers<[1], [0], [0], [1], [0, 0, 1, 1], [], []>} : vector<16x4xf32>, vector<4x1xf32>, vector<16x1xf32> -> vector<16x1xf32>
    %90 = arith.addf %89, %61 : vector<16x1xf32>
    %cst_50 = arith.constant -3.000000e+01 : f32
    %91 = vector.broadcast %cst_50 : f32 to vector<16x1xf32>
    %92 = arith.maximumf %90, %91 : vector<16x1xf32>
    %cst_51 = arith.constant 0.000000e+00 : f32
    %93 = vector.broadcast %cst_51 : f32 to vector<16x1xf32>
    %94 = arith.subf %93, %92 : vector<16x1xf32>
    %95 = math.exp %94 : vector<16x1xf32>
    %cst_52 = arith.constant 1.000000e+00 : f32
    %96 = vector.broadcast %cst_52 : f32 to vector<16x1xf32>
    %97 = arith.addf %96, %95 : vector<16x1xf32>
    %cst_53 = arith.constant 1.000000e+00 : f32
    %98 = vector.broadcast %cst_53 : f32 to vector<16x1xf32>
    %99 = arith.divf %98, %97 : vector<16x1xf32>
    %100 = vector.broadcast %99 : vector<16x1xf32> to vector<16x384xf32>
    %101 = arith.mulf %77, %100 : vector<16x384xf32>
    %102 = arith.truncf %101 : vector<16x384xf32> to vector<16x384xbf16>
    %c0_54 = arith.constant 0 : index
    %c0_55 = arith.constant 0 : index
    %103 = vector.load %arg10[%c0_54, %c0_55] : memref<16x768xbf16, #tpu.memory_space<vmem>>, vector<16x384xbf16>
    tpu.vector_store %arg10[%c0_54, %c0_55], %102 {strides = array<i32>} : memref<16x768xbf16, #tpu.memory_space<vmem>>, vector<16x384xbf16>,
    %104 = vector.extract_strided_slice %76 {offsets = [0, 384], sizes = [16, 384], strides = [1, 1]} : vector<16x768xf32> to vector<16x384xf32>
    %c0_56 = arith.constant 0 : index
    %c0_57 = arith.constant 0 : index
    %105 = vector.load %arg7[%c0_56, %c0_57] : memref<1x384xf32, #tpu.memory_space<vmem>>, vector<1x384xf32>
    %106 = vector.broadcast %105 : vector<1x384xf32> to vector<16x384xf32>
    %107 = arith.mulf %104, %106 : vector<16x384xf32>
    %cst_58 = arith.constant dense<0.000000e+00> : vector<16xf32>
    %108 = vector.multi_reduction <add>, %107, %cst_58 [1] : vector<16x384xf32> to vector<16xf32>
    %109 = vector.shape_cast %108 : vector<16xf32> to vector<16x1xf32>
    %c0_59 = arith.constant 0 : index
    %c0_60 = arith.constant 0 : index
    %110 = vector.load %arg4[%c0_59, %c0_60] : memref<4x16xf32, #tpu.memory_space<vmem>>, vector<4x16xf32>
    %cst_61 = arith.constant dense<0.000000e+00> : vector<4x1xf32>
    %111 = tpu.matmul %110, %109, %cst_61 {dimension_numbers = #tpu.dot_dimension_numbers<[1], [0], [0], [1], [0, 0, 1, 1], [], []>} : vector<4x16xf32>, vector<16x1xf32>, vector<4x1xf32> -> vector<4x1xf32>
    %112 = arith.addf %111, %60 : vector<4x1xf32>
    %cst_62 = arith.constant 0.000000e+00 : f32
    %113 = vector.broadcast %cst_62 : f32 to vector<4x1xf32>
    %114 = arith.maximumf %112, %113 : vector<4x1xf32>
    %c0_63 = arith.constant 0 : index
    %c0_64 = arith.constant 0 : index
    %115 = vector.load %arg5[%c0_63, %c0_64] : memref<16x4xf32, #tpu.memory_space<vmem>>, vector<16x4xf32>
    %cst_65 = arith.constant dense<0.000000e+00> : vector<16x1xf32>
    %116 = tpu.matmul %115, %114, %cst_65 {dimension_numbers = #tpu.dot_dimension_numbers<[1], [0], [0], [1], [0, 0, 1, 1], [], []>} : vector<16x4xf32>, vector<4x1xf32>, vector<16x1xf32> -> vector<16x1xf32>
    %117 = arith.addf %116, %61 : vector<16x1xf32>
    %cst_66 = arith.constant -3.000000e+01 : f32
    %118 = vector.broadcast %cst_66 : f32 to vector<16x1xf32>
    %119 = arith.maximumf %117, %118 : vector<16x1xf32>
    %cst_67 = arith.constant 0.000000e+00 : f32
    %120 = vector.broadcast %cst_67 : f32 to vector<16x1xf32>
    %121 = arith.subf %120, %119 : vector<16x1xf32>
    %122 = math.exp %121 : vector<16x1xf32>
    %cst_68 = arith.constant 1.000000e+00 : f32
    %123 = vector.broadcast %cst_68 : f32 to vector<16x1xf32>
    %124 = arith.addf %123, %122 : vector<16x1xf32>
    %cst_69 = arith.constant 1.000000e+00 : f32
    %125 = vector.broadcast %cst_69 : f32 to vector<16x1xf32>
    %126 = arith.divf %125, %124 : vector<16x1xf32>
    %127 = vector.broadcast %126 : vector<16x1xf32> to vector<16x384xf32>
    %128 = arith.mulf %104, %127 : vector<16x384xf32>
    %129 = arith.truncf %128 : vector<16x384xf32> to vector<16x384xbf16>
    %c0_70 = arith.constant 0 : index
    %c384_71 = arith.constant 384 : index
    %130 = vector.load %arg10[%c0_70, %c384_71] : memref<16x768xbf16, #tpu.memory_space<vmem>>, vector<16x384xbf16>
    tpu.vector_store %arg10[%c0_70, %c384_71], %129 {strides = array<i32>} : memref<16x768xbf16, #tpu.memory_space<vmem>>, vector<16x384xbf16>,
    %c0_72 = arith.constant 0 : index
    %c0_73 = arith.constant 0 : index
    %131 = vector.load %arg3[%c0_72, %c0_73] : memref<4x16xbf16, #tpu.memory_space<vmem>>, vector<4x16xbf16>
    %c0_74 = arith.constant 0 : index
    %c0_75 = arith.constant 0 : index
    %132 = vector.load %arg10[%c0_74, %c0_75] : memref<16x768xbf16, #tpu.memory_space<vmem>>, vector<16x768xbf16>
    %cst_76 = arith.constant dense<0.000000e+00> : vector<4x768xf32>
    %133 = tpu.matmul %131, %132, %cst_76 {dimension_numbers = #tpu.dot_dimension_numbers<[1], [0], [0], [1], [0, 0, 1, 1], [], []>} : vector<4x16xbf16>, vector<16x768xbf16>, vector<4x768xf32> -> vector<4x768xf32>
    %134 = vector.broadcast %62 : vector<4x1xf32> to vector<4x768xf32>
    %135 = arith.addf %133, %134 : vector<4x768xf32>
    %136 = vector.extract_strided_slice %135 {offsets = [0, 0], sizes = [4, 384], strides = [1, 1]} : vector<4x768xf32> to vector<4x384xf32>
    %c0_77 = arith.constant 0 : index
    %c0_78 = arith.constant 0 : index
    %c0_79 = arith.constant 0 : index
    %137 = vector.load %arg1[%c0_77, %c0_78, %c0_79] : memref<2x8x422xf32, #tpu.memory_space<vmem>>, vector<1x8x422xf32>
    %138 = vector.shape_cast %137 : vector<1x8x422xf32> to vector<8x422xf32>
    %139 = vector.extract_strided_slice %138 {offsets = [0, 19], sizes = [4, 384], strides = [1, 1]} : vector<8x422xf32> to vector<4x384xf32>
    %140 = arith.addf %136, %139 : vector<4x384xf32>
    %c0_80 = arith.constant 0 : index
    %c0_81 = arith.constant 0 : index
    %c0_82 = arith.constant 0 : index
    %141 = vector.load %arg8[%c0_80, %c0_81, %c0_82] : memref<2x4x384xf32, #tpu.memory_space<vmem>>, vector<1x4x384xf32>
    %142 = vector.shape_cast %141 : vector<1x4x384xf32> to vector<4x384xf32>
    %143 = vector.shape_cast %140 : vector<4x384xf32> to vector<1x4x384xf32>
    tpu.vector_store %arg8[%c0_80, %c0_81, %c0_82], %143 {strides = array<i32>} : memref<2x4x384xf32, #tpu.memory_space<vmem>>, vector<1x4x384xf32>,
    %144 = vector.extract_strided_slice %135 {offsets = [0, 384], sizes = [4, 384], strides = [1, 1]} : vector<4x768xf32> to vector<4x384xf32>
    %c1_83 = arith.constant 1 : index
    %c0_84 = arith.constant 0 : index
    %c0_85 = arith.constant 0 : index
    %145 = vector.load %arg1[%c1_83, %c0_84, %c0_85] : memref<2x8x422xf32, #tpu.memory_space<vmem>>, vector<1x8x422xf32>
    %146 = vector.shape_cast %145 : vector<1x8x422xf32> to vector<8x422xf32>
    %147 = vector.extract_strided_slice %146 {offsets = [0, 19], sizes = [4, 384], strides = [1, 1]} : vector<8x422xf32> to vector<4x384xf32>
    %148 = arith.addf %144, %147 : vector<4x384xf32>
    %c1_86 = arith.constant 1 : index
    %c0_87 = arith.constant 0 : index
    %c0_88 = arith.constant 0 : index
    %149 = vector.load %arg8[%c1_86, %c0_87, %c0_88] : memref<2x4x384xf32, #tpu.memory_space<vmem>>, vector<1x4x384xf32>
    %150 = vector.shape_cast %149 : vector<1x4x384xf32> to vector<4x384xf32>
    %151 = vector.shape_cast %148 : vector<4x384xf32> to vector<1x4x384xf32>
    tpu.vector_store %arg8[%c1_86, %c0_87, %c0_88], %151 {strides = array<i32>} : memref<2x4x384xf32, #tpu.memory_space<vmem>>, vector<1x4x384xf32>,
    return
  }
  func.func @transform_0(%arg0: i32) -> (i32, i32, i32) {
    %c0_i32 = arith.constant 0 : i32
    %c0_i32_0 = arith.constant 0 : i32
    %c0_i32_1 = arith.constant 0 : i32
    return %arg0, %c0_i32, %c0_i32_0 : i32, i32, i32
  }
  func.func @transform_1(%arg0: i32) -> (i32, i32) {
    %c0_i32 = arith.constant 0 : i32
    %c0_i32_0 = arith.constant 0 : i32
    %c0_i32_1 = arith.constant 0 : i32
    return %c0_i32, %c0_i32_0 : i32, i32
  }
  func.func @transform_2(%arg0: i32) -> (i32, i32) {
    %c0_i32 = arith.constant 0 : i32
    %c0_i32_0 = arith.constant 0 : i32
    %c0_i32_1 = arith.constant 0 : i32
    return %c0_i32, %c0_i32_0 : i32, i32
  }
  func.func @transform_3(%arg0: i32) -> (i32, i32) {
    %c0_i32 = arith.constant 0 : i32
    %c0_i32_0 = arith.constant 0 : i32
    %c0_i32_1 = arith.constant 0 : i32
    return %c0_i32, %c0_i32_0 : i32, i32
  }
  func.func @transform_4(%arg0: i32) -> (i32, i32) {
    %c0_i32 = arith.constant 0 : i32
    %c0_i32_0 = arith.constant 0 : i32
    %c0_i32_1 = arith.constant 0 : i32
    return %c0_i32, %c0_i32_0 : i32, i32
  }
  func.func @transform_5(%arg0: i32) -> (i32, i32) {
    %c0_i32 = arith.constant 0 : i32
    %c0_i32_0 = arith.constant 0 : i32
    %c0_i32_1 = arith.constant 0 : i32
    return %c0_i32, %c0_i32_0 : i32, i32
  }
  func.func @transform_6(%arg0: i32) -> (i32, i32) {
    %c0_i32 = arith.constant 0 : i32
    %c0_i32_0 = arith.constant 0 : i32
    %c0_i32_1 = arith.constant 0 : i32
    return %c0_i32, %c0_i32_0 : i32, i32
  }
  func.func @transform_7(%arg0: i32) -> (i32, i32, i32) {
    %c0_i32 = arith.constant 0 : i32
    %c0_i32_0 = arith.constant 0 : i32
    %c0_i32_1 = arith.constant 0 : i32
    return %arg0, %c0_i32, %c0_i32_0 : i32, i32, i32
  }
}

</mosaic_0001>

<llo_original>
// kernel: tpu_custom_call.1
$region0: #{tpu_custom_call.1}
  #allocation0 [shape = 'u32[]', space=smem, size = 0x4, offset = 0x4, fixed_abs, tag = 'smem constant byte address 0x4 - core index']
  #allocation1 [shape = 'u32[144,128]{1,0:T(1,128)}', space=vmem, size = 0x12000, scoped, tag = 'internal scratch']
  #allocation2 [shape = 'bf16[72,768]{1,0:T(8,128)(2,1)}', space=vmem, size = 0x1b000, scoped, tag = 'scratch operand']
  #allocation3 [shape = 'bf16[16,768]{1,0:T(16,128)(2,1)}', space=vmem, size = 0x6000, scoped, tag = 'scratch operand']
  %s0 = inlined_call_operand.vmem [shape: f32[2,8,422], index: 0, kind: input, shape index: {}]
  %s1 = inlined_call_operand.vmem [shape: bf16[16,72], index: 1, kind: input, shape index: {}]
  %s2 = inlined_call_operand.hbm [shape: bf16[4,16], index: 2, kind: input, shape index: {}]
  %s3 = inlined_call_operand.vmem [shape: f32[4,16], index: 3, kind: input, shape index: {}]
  %s4 = inlined_call_operand.vmem [shape: f32[16,4], index: 4, kind: input, shape index: {}]
  %s5 = inlined_call_operand.vmem [shape: f32[48,1], index: 5, kind: input, shape index: {}]
  %s6 = inlined_call_operand.vmem [shape: f32[1,384], index: 6, kind: input, shape index: {}]
  %s7 = inlined_call_operand.hbm [shape: f32[2,4,384], index: 7, kind: output, shape index: {}]
  %s8 = sld [smem:[#allocation0]]
  $region42: #{tpu_custom_call.1} parent=0
    _
  %s10 = ssub.s32 1, %s8
  %s11 = scalar_select 0, %s10, %s8
  $region1: #{tpu_custom_call.1} parent=0
    #allocation4 [shape = 'u8[1024]{0}', space=vmem, size = 0x400, scoped, tag = 'input window, operand 2, single buffered']
    #allocation5 [shape = 's32[1]{0}', space=sflag, size = 0x4, scoped, tag = 'scoped memory for tpu_custom_call.1']
    #allocation6 [shape = 's32[1]{0}', space=sflag, size = 0x4, scoped, tag = 'scoped memory for tpu_custom_call.1']
    #allocation7 [shape = 'u8[12288]{0}', space=vmem, size = 0x3000, scoped, tag = 'output window, operand 0, single buffered']
    %12 = vsyncpa [#allocation5], 0
    %13 = vsyncpa [#allocation6], 0
    // Predicated region
    $region2: #{tpu_custom_call.1} parent=1 // pred_check
      _
    $region3: #{tpu_custom_call.1} parent=1 // pred_check_branch
      %15 = sbr.rel (0) target = $region5
    $region4: #{tpu_custom_call.1} parent=1 // pred_region
      _
    $region5: #{tpu_custom_call.1} parent=1 // pred_fallthru
      _
    // Predicated region
    $region6: #{tpu_custom_call.1} parent=1 // pred_check
      _
    $region7: #{tpu_custom_call.1} parent=1 // pred_check_branch
      %17 = sbr.rel (0) target = $region9
    $region8: #{tpu_custom_call.1} parent=1 // pred_region
      _
    $region9: #{tpu_custom_call.1} parent=1 // pred_fallthru
      _
    // Predicated region
    $region10: #{tpu_custom_call.1} parent=1 // pred_check
      _
    $region11: #{tpu_custom_call.1} parent=1 // pred_check_branch
      %19 = sbr.rel (0) target = $region13
    $region12: #{tpu_custom_call.1} parent=1 // pred_region
      %s21 = ssub.s32 32, 32
      %22 = vsyncadd [#allocation5], %s21
      %s24 = sshll.u32 [#allocation4], 4
      %s25 = int_to_ptr.vmem [resolvable:$true] %s24
      %27 = dma.hbm_to_vmem [thread:$0]  %s2, 32, %s25, [#allocation5]
    $region13: #{tpu_custom_call.1} parent=1 // pred_fallthru
      _
    // Predicated region
    $region14: #{tpu_custom_call.1} parent=1 // pred_check
      _
    $region15: #{tpu_custom_call.1} parent=1 // pred_check_branch
      %29 = sbr.rel (0) target = $region17
    $region16: #{tpu_custom_call.1} parent=1 // pred_region
      _
    $region17: #{tpu_custom_call.1} parent=1 // pred_fallthru
      _
    // Predicated region
    $region18: #{tpu_custom_call.1} parent=1 // pred_check
      _
    $region19: #{tpu_custom_call.1} parent=1 // pred_check_branch
      %31 = sbr.rel (0) target = $region21
    $region20: #{tpu_custom_call.1} parent=1 // pred_region
      _
    $region21: #{tpu_custom_call.1} parent=1 // pred_fallthru
      _
    // Predicated region
    $region22: #{tpu_custom_call.1} parent=1 // pred_check
      _
    $region23: #{tpu_custom_call.1} parent=1 // pred_check_branch
      %33 = sbr.rel (0) target = $region25
    $region24: #{tpu_custom_call.1} parent=1 // pred_region
      _
    $region25: #{tpu_custom_call.1} parent=1 // pred_fallthru
      _
    // Predicated region
    $region26: #{tpu_custom_call.1} parent=1 // pred_check
      _
    $region27: #{tpu_custom_call.1} parent=1 // pred_check_branch
      %35 = sbr.rel (0) target = $region29
    $region28: #{tpu_custom_call.1} parent=1 // pred_region
      _
    $region29: #{tpu_custom_call.1} parent=1 // pred_fallthru
      _
    // Predicated region
    $region30: #{tpu_custom_call.1} parent=1 // pred_check
      _
    $region31: #{tpu_custom_call.1} parent=1 // pred_check_branch
      %37 = sbr.rel (0) target = $region33
    $region32: #{tpu_custom_call.1} parent=1 // pred_region
      %38 = dma.done [#allocation5], 32
    $region33: #{tpu_custom_call.1} parent=1 // pred_fallthru
      _
    %v40 = vld [vmem:[%s0] sm:$0xff]
    %v41 = vld [vmem:[%s0 + $0x8] sm:$0xff]
    %v42 = vld [vmem:[%s0 + $0x10] sm:$0xff]
    %v43 = vld [vmem:[%s0 + $0x18] sm:$0xff]
    %v44 = vpack.c.bf16 %v40, %v40
    %v45 = vpack.c.bf16 %v41, %v41
    %v46 = vpack.c.bf16 %v42, %v42
    %v50 = vunpack.c.l.b16 %v44
    %v51 = vunpack.c.l.b16 %v45
    %v52 = vunpack.c.l.b16 %v46
    %v53 = vpack.c.b16 %v51, %v50
    %v54 = vpack.c.b16 %v52, %v52
    %57 = vst [vmem:[#allocation2] sm:$0xff] %v53
    %58 = vst [vmem:[#allocation2 + $0x8] sm:$0xf] %v54
    %v59 = vpack.c.bf16 %v43, %v43
    %v61 = vunpack.c.l.b16 %v59
    %v62 = vpack.c.b16 %v61, %v52
    %63 = vrot.lane.b32.xlu0 %v53, 127
    %v64 = vpop.permute.xlu0 %63
    %65 = vrot.lane.b32.xlu0 %v62, 127
    %v66 = vpop.permute.xlu0 %65
    %v67 = vrot.slane %v64, 4
    %v68 = vrot.slane %v66, 4
    %vm69 = vcmask 1043456
    %v70 = vsel %vm69, %v67, %v68
    %vm71 = vcmask 1039360
    %v72 = vsel %vm71, %v64, %v70
    %v73 = vsel %vm71, %v66, %v68
    %76 = vst [vmem:[#allocation2 + $0x18] sm:$0xff] %v72
    %77 = vst [vmem:[#allocation2 + $0x20] sm:$0xf] %v73
    %78 = vrot.lane.b32.xlu0 %v53, 126
    %v79 = vpop.permute.xlu0 %78
    %80 = vrot.lane.b32.xlu0 %v62, 126
    %v81 = vpop.permute.xlu0 %80
    %v82 = vrot.slane %v79, 4
    %v83 = vrot.slane %v81, 4
    %v84 = vsel %vm69, %v82, %v83
    %vm85 = vcmask 1031168
    %v86 = vsel %vm85, %v79, %v84
    %v87 = vsel %vm85, %v81, %v83
    %90 = vst [vmem:[#allocation2 + $0x30] sm:$0xff] %v86
    %91 = vst [vmem:[#allocation2 + $0x38] sm:$0xf] %v87
    %92 = vrot.lane.b32.xlu0 %v53, 110
    %v93 = vpop.permute.xlu0 %92
    %94 = vrot.lane.b32.xlu0 %v62, 110
    %v95 = vpop.permute.xlu0 %94
    %v96 = vrot.slane %v93, 4
    %v97 = vrot.slane %v95, 4
    %v98 = vsel %vm69, %v96, %v97
    %vm99 = vcmask 900096
    %v100 = vsel %vm99, %v93, %v98
    %v101 = vsel %vm99, %v95, %v97
    %104 = vst [vmem:[#allocation2 + $0x48] sm:$0xff] %v100
    %105 = vst [vmem:[#allocation2 + $0x50] sm:$0xf] %v101
    %106 = vrot.lane.b32.xlu0 %v53, 109
    %v107 = vpop.permute.xlu0 %106
    %108 = vrot.lane.b32.xlu0 %v62, 109
    %v109 = vpop.permute.xlu0 %108
    %v110 = vrot.slane %v107, 4
    %v111 = vrot.slane %v109, 4
    %v112 = vsel %vm69, %v110, %v111
    %vm113 = vcmask 891904
    %v114 = vsel %vm113, %v107, %v112
    %v115 = vsel %vm113, %v109, %v111
    %118 = vst [vmem:[#allocation2 + $0x60] sm:$0xff] %v114
    %119 = vst [vmem:[#allocation2 + $0x68] sm:$0xf] %v115
    %120 = vrot.lane.b32.xlu0 %v53, 108
    %v121 = vpop.permute.xlu0 %120
    %122 = vrot.lane.b32.xlu0 %v62, 108
    %v123 = vpop.permute.xlu0 %122
    %v124 = vrot.slane %v121, 4
    %v125 = vrot.slane %v123, 4
    %v126 = vsel %vm69, %v124, %v125
    %vm127 = vcmask 883712
    %v128 = vsel %vm127, %v121, %v126
    %v129 = vsel %vm127, %v123, %v125
    %132 = vst [vmem:[#allocation2 + $0x78] sm:$0xff] %v128
    %133 = vst [vmem:[#allocation2 + $0x80] sm:$0xf] %v129
    %134 = vrot.lane.b32.xlu0 %v53, 92
    %v135 = vpop.permute.xlu0 %134
    %136 = vrot.lane.b32.xlu0 %v62, 92
    %v137 = vpop.permute.xlu0 %136
    %v138 = vrot.slane %v135, 4
    %v139 = vrot.slane %v137, 4
    %v140 = vsel %vm69, %v138, %v139
    %vm141 = vcmask 752640
    %v142 = vsel %vm141, %v135, %v140
    %v143 = vsel %vm141, %v137, %v139
    %146 = vst [vmem:[#allocation2 + $0x90] sm:$0xff] %v142
    %147 = vst [vmem:[#allocation2 + $0x98] sm:$0xf] %v143
    %148 = vrot.lane.b32.xlu0 %v53, 91
    %v149 = vpop.permute.xlu0 %148
    %150 = vrot.lane.b32.xlu0 %v62, 91
    %v151 = vpop.permute.xlu0 %150
    %v152 = vrot.slane %v149, 4
    %v153 = vrot.slane %v151, 4
    %v154 = vsel %vm69, %v152, %v153
    %vm155 = vcmask 744448
    %v156 = vsel %vm155, %v149, %v154
    %v157 = vsel %vm155, %v151, %v153
    %160 = vst [vmem:[#allocation2 + $0xa8] sm:$0xff] %v156
    %161 = vst [vmem:[#allocation2 + $0xb0] sm:$0xf] %v157
    %162 = vrot.lane.b32.xlu0 %v53, 90
    %v163 = vpop.permute.xlu0 %162
    %164 = vrot.lane.b32.xlu0 %v62, 90
    %v165 = vpop.permute.xlu0 %164
    %v166 = vrot.slane %v163, 4
    %v167 = vrot.slane %v165, 4
    %v168 = vsel %vm69, %v166, %v167
    %vm169 = vcmask 736256
    %v170 = vsel %vm169, %v163, %v168
    %v171 = vsel %vm169, %v165, %v167
    %174 = vst [vmem:[#allocation2 + $0xc0] sm:$0xff] %v170
    %175 = vst [vmem:[#allocation2 + $0xc8] sm:$0xf] %v171
    %s176 = scalar_lea.vmem %s0, 32
    %v177 = vld [vmem:[%s176] sm:$0xff]
    %v178 = vld [vmem:[%s176 + $0x8] sm:$0xff]
    %v179 = vld [vmem:[%s176 + $0x10] sm:$0xff]
    %v180 = vld [vmem:[%s176 + $0x18] sm:$0xff]
    %v181 = vpack.c.bf16 %v177, %v177
    %v182 = vpack.c.bf16 %v178, %v178
    %v183 = vpack.c.bf16 %v179, %v179
    %v187 = vunpack.c.l.b16 %v181
    %v188 = vunpack.c.l.b16 %v182
    %v189 = vunpack.c.l.b16 %v183
    %v190 = vpack.c.b16 %v188, %v187
    %v191 = vpack.c.b16 %v189, %v189
    %194 = vst [vmem:[#allocation2 + $0xc] sm:$0xff] %v190
    %195 = vst [vmem:[#allocation2 + $0x14] sm:$0xf] %v191
    %v196 = vpack.c.bf16 %v180, %v180
    %v198 = vunpack.c.l.b16 %v196
    %v199 = vpack.c.b16 %v198, %v189
    %200 = vrot.lane.b32.xlu0 %v190, 127
    %v201 = vpop.permute.xlu0 %200
    %202 = vrot.lane.b32.xlu0 %v199, 127
    %v203 = vpop.permute.xlu0 %202
    %v204 = vrot.slane %v201, 4
    %v205 = vrot.slane %v203, 4
    %v206 = vsel %vm69, %v204, %v205
    %v207 = vsel %vm71, %v201, %v206
    %v208 = vsel %vm71, %v203, %v205
    %211 = vst [vmem:[#allocation2 + $0x24] sm:$0xff] %v207
    %212 = vst [vmem:[#allocation2 + $0x2c] sm:$0xf] %v208
    %213 = vrot.lane.b32.xlu0 %v190, 126
    %v214 = vpop.permute.xlu0 %213
    %215 = vrot.lane.b32.xlu0 %v199, 126
    %v216 = vpop.permute.xlu0 %215
    %v217 = vrot.slane %v214, 4
    %v218 = vrot.slane %v216, 4
    %v219 = vsel %vm69, %v217, %v218
    %v220 = vsel %vm85, %v214, %v219
    %v221 = vsel %vm85, %v216, %v218
    %224 = vst [vmem:[#allocation2 + $0x3c] sm:$0xff] %v220
    %225 = vst [vmem:[#allocation2 + $0x44] sm:$0xf] %v221
    %226 = vrot.lane.b32.xlu0 %v190, 110
    %v227 = vpop.permute.xlu0 %226
    %228 = vrot.lane.b32.xlu0 %v199, 110
    %v229 = vpop.permute.xlu0 %228
    %v230 = vrot.slane %v227, 4
    %v231 = vrot.slane %v229, 4
    %v232 = vsel %vm69, %v230, %v231
    %v233 = vsel %vm99, %v227, %v232
    %v234 = vsel %vm99, %v229, %v231
    %237 = vst [vmem:[#allocation2 + $0x54] sm:$0xff] %v233
    %238 = vst [vmem:[#allocation2 + $0x5c] sm:$0xf] %v234
    %239 = vrot.lane.b32.xlu0 %v190, 109
    %v240 = vpop.permute.xlu0 %239
    %241 = vrot.lane.b32.xlu0 %v199, 109
    %v242 = vpop.permute.xlu0 %241
    %v243 = vrot.slane %v240, 4
    %v244 = vrot.slane %v242, 4
    %v245 = vsel %vm69, %v243, %v244
    %v246 = vsel %vm113, %v240, %v245
    %v247 = vsel %vm113, %v242, %v244
    %250 = vst [vmem:[#allocation2 + $0x6c] sm:$0xff] %v246
    %251 = vst [vmem:[#allocation2 + $0x74] sm:$0xf] %v247
    %252 = vrot.lane.b32.xlu0 %v190, 108
    %v253 = vpop.permute.xlu0 %252
    %254 = vrot.lane.b32.xlu0 %v199, 108
    %v255 = vpop.permute.xlu0 %254
    %v256 = vrot.slane %v253, 4
    %v257 = vrot.slane %v255, 4
    %v258 = vsel %vm69, %v256, %v257
    %v259 = vsel %vm127, %v253, %v258
    %v260 = vsel %vm127, %v255, %v257
    %263 = vst [vmem:[#allocation2 + $0x84] sm:$0xff] %v259
    %264 = vst [vmem:[#allocation2 + $0x8c] sm:$0xf] %v260
    %265 = vrot.lane.b32.xlu0 %v190, 92
    %v266 = vpop.permute.xlu0 %265
    %267 = vrot.lane.b32.xlu0 %v199, 92
    %v268 = vpop.permute.xlu0 %267
    %v269 = vrot.slane %v266, 4
    %v270 = vrot.slane %v268, 4
    %v271 = vsel %vm69, %v269, %v270
    %v272 = vsel %vm141, %v266, %v271
    %v273 = vsel %vm141, %v268, %v270
    %276 = vst [vmem:[#allocation2 + $0x9c] sm:$0xff] %v272
    %277 = vst [vmem:[#allocation2 + $0xa4] sm:$0xf] %v273
    %278 = vrot.lane.b32.xlu0 %v190, 91
    %v279 = vpop.permute.xlu0 %278
    %280 = vrot.lane.b32.xlu0 %v199, 91
    %v281 = vpop.permute.xlu0 %280
    %v282 = vrot.slane %v279, 4
    %v283 = vrot.slane %v281, 4
    %v284 = vsel %vm69, %v282, %v283
    %v285 = vsel %vm155, %v279, %v284
    %v286 = vsel %vm155, %v281, %v283
    %289 = vst [vmem:[#allocation2 + $0xb4] sm:$0xff] %v285
    %290 = vst [vmem:[#allocation2 + $0xbc] sm:$0xf] %v286
    %291 = vrot.lane.b32.xlu0 %v190, 90
    %v292 = vpop.permute.xlu0 %291
    %293 = vrot.lane.b32.xlu0 %v199, 90
    %v294 = vpop.permute.xlu0 %293
    %v295 = vrot.slane %v292, 4
    %v296 = vrot.slane %v294, 4
    %v297 = vsel %vm69, %v295, %v296
    %v298 = vsel %vm169, %v292, %v297
    %v299 = vsel %vm169, %v294, %v296
    %302 = vst [vmem:[#allocation2 + $0xcc] sm:$0xff] %v298
    %303 = vst [vmem:[#allocation2 + $0xd4] sm:$0xf] %v299
    %v304 = vld [vmem:[%s5] sm:$0xff]
    %v305 = vld [vmem:[%s5 + $0x8] sm:$0xff]
    %v306 = vld [vmem:[%s5 + $0x10] sm:$0xff]
    %v307 = vld [vmem:[%s5 + $0x18] sm:$0xff]
    %v308 = vld [vmem:[%s5 + $0x20] sm:$0xff]
    %v309 = vld [vmem:[%s5 + $0x28] sm:$0xff]
    %v310 = vld [vmem:[%s1] sm:$0xf]
    %v311 = vld [vmem:[%s1 + $0x4] sm:$0xf]
    %v312 = vld [vmem:[#allocation2] sm:$0xff]
    %v313 = vld [vmem:[#allocation2 + $0x8] sm:$0xff]
    %v314 = vld [vmem:[#allocation2 + $0x10] sm:$0xff]
    %v315 = vld [vmem:[#allocation2 + $0x18] sm:$0xff]
    %v316 = vld [vmem:[#allocation2 + $0x20] sm:$0xff]
    %v317 = vld [vmem:[#allocation2 + $0x28] sm:$0xff]
    %v318 = vld [vmem:[#allocation2 + $0x30] sm:$0xff]
    %v319 = vld [vmem:[#allocation2 + $0x38] sm:$0xff]
    %v320 = vld [vmem:[#allocation2 + $0x40] sm:$0xff]
    %v321 = vld [vmem:[#allocation2 + $0x48] sm:$0xff]
    %v322 = vld [vmem:[#allocation2 + $0x50] sm:$0xff]
    %v323 = vld [vmem:[#allocation2 + $0x58] sm:$0xff]
    %v324 = vld [vmem:[#allocation2 + $0x60] sm:$0xff]
    %v325 = vld [vmem:[#allocation2 + $0x68] sm:$0xff]
    %v326 = vld [vmem:[#allocation2 + $0x70] sm:$0xff]
    %v327 = vld [vmem:[#allocation2 + $0x78] sm:$0xff]
    %v328 = vld [vmem:[#allocation2 + $0x80] sm:$0xff]
    %v329 = vld [vmem:[#allocation2 + $0x88] sm:$0xff]
    %v330 = vld [vmem:[#allocation2 + $0x90] sm:$0xff]
    %v331 = vld [vmem:[#allocation2 + $0x98] sm:$0xff]
    %v332 = vld [vmem:[#allocation2 + $0xa0] sm:$0xff]
    %v333 = vld [vmem:[#allocation2 + $0xa8] sm:$0xff]
    %v334 = vld [vmem:[#allocation2 + $0xb0] sm:$0xff]
    %v335 = vld [vmem:[#allocation2 + $0xb8] sm:$0xff]
    %v336 = vld [vmem:[#allocation2 + $0xc0] sm:$0xff]
    %v337 = vld [vmem:[#allocation2 + $0xc8] sm:$0xff]
    %v338 = vld [vmem:[#allocation2 + $0xd0] sm:$0xff]
    %340 = vset.pattern.permute.xlu0 0
    %341 = vperm.xlu0 %340, %v304
    %v342 = vpop.permute.xlu0 %341
    %345 = vset.pattern.permute.xlu0 0
    %346 = vperm.xlu0 %345, %v305
    %v347 = vpop.permute.xlu0 %346
    %v351 = vunpack.c.l.b16 %v310
    %v352 = vunpack.c.l.b16 %v311
    %v353 = vpack.c.b16 %v352, %v351
    %v381 = vunpack.c.l.b16 %v312
    %v382 = vunpack.c.h.b16 %v312
    %v383 = vunpack.c.l.b16 %v313
    %v384 = vunpack.c.h.b16 %v313
    %v385 = vunpack.c.l.b16 %v314
    %v386 = vunpack.c.h.b16 %v314
    %v387 = vunpack.c.l.b16 %v315
    %v388 = vunpack.c.h.b16 %v315
    %v389 = vunpack.c.l.b16 %v316
    %v390 = vunpack.c.h.b16 %v316
    %v391 = vunpack.c.l.b16 %v317
    %v392 = vunpack.c.h.b16 %v317
    %v393 = vunpack.c.l.b16 %v318
    %v394 = vunpack.c.h.b16 %v318
    %v395 = vunpack.c.l.b16 %v319
    %v396 = vunpack.c.h.b16 %v319
    %v397 = vunpack.c.l.b16 %v320
    %v398 = vunpack.c.h.b16 %v320
    %v399 = vunpack.c.l.b16 %v321
    %v400 = vunpack.c.h.b16 %v321
    %v401 = vunpack.c.l.b16 %v322
    %v402 = vunpack.c.h.b16 %v322
    %v403 = vunpack.c.l.b16 %v323
    %v404 = vunpack.c.h.b16 %v323
    %v405 = vunpack.c.l.b16 %v324
    %v406 = vunpack.c.h.b16 %v324
    %v407 = vunpack.c.l.b16 %v325
    %v408 = vunpack.c.h.b16 %v325
    %v409 = vunpack.c.l.b16 %v326
    %v410 = vunpack.c.h.b16 %v326
    %v411 = vunpack.c.l.b16 %v327
    %v412 = vunpack.c.h.b16 %v327
    %v413 = vunpack.c.l.b16 %v328
    %v414 = vunpack.c.h.b16 %v328
    %v415 = vunpack.c.l.b16 %v329
    %v416 = vunpack.c.h.b16 %v329
    %v417 = vunpack.c.l.b16 %v330
    %v418 = vunpack.c.h.b16 %v330
    %v419 = vunpack.c.l.b16 %v331
    %v420 = vunpack.c.h.b16 %v331
    %v421 = vunpack.c.l.b16 %v332
    %v422 = vunpack.c.h.b16 %v332
    %v423 = vunpack.c.l.b16 %v333
    %v424 = vunpack.c.h.b16 %v333
    %v425 = vunpack.c.l.b16 %v334
    %v426 = vunpack.c.h.b16 %v334
    %v427 = vunpack.c.l.b16 %v335
    %v428 = vunpack.c.h.b16 %v335
    %v429 = vunpack.c.l.b16 %v336
    %v430 = vunpack.c.h.b16 %v336
    %v431 = vunpack.c.l.b16 %v337
    %v432 = vunpack.c.h.b16 %v337
    %v433 = vunpack.c.l.b16 %v338
    %v434 = vunpack.c.h.b16 %v338
    %v435 = vpack.c.b16 %v387, %v381
    %v436 = vpack.c.b16 %v388, %v382
    %v437 = vpack.c.b16 %v389, %v383
    %v438 = vpack.c.b16 %v390, %v384
    %v439 = vpack.c.b16 %v391, %v385
    %v440 = vpack.c.b16 %v392, %v386
    %v441 = vpack.c.b16 %v399, %v393
    %v442 = vpack.c.b16 %v400, %v394
    %v443 = vpack.c.b16 %v401, %v395
    %v444 = vpack.c.b16 %v402, %v396
    %v445 = vpack.c.b16 %v403, %v397
    %v446 = vpack.c.b16 %v404, %v398
    %v447 = vpack.c.b16 %v411, %v405
    %v448 = vpack.c.b16 %v412, %v406
    %v449 = vpack.c.b16 %v413, %v407
    %v450 = vpack.c.b16 %v414, %v408
    %v451 = vpack.c.b16 %v415, %v409
    %v452 = vpack.c.b16 %v416, %v410
    %v453 = vpack.c.b16 %v423, %v417
    %v454 = vpack.c.b16 %v424, %v418
    %v455 = vpack.c.b16 %v425, %v419
    %v456 = vpack.c.b16 %v426, %v420
    %v457 = vpack.c.b16 %v427, %v421
    %v458 = vpack.c.b16 %v428, %v422
    %v459 = vpack.c.b16 %v429, %v429
    %v460 = vpack.c.b16 %v430, %v430
    %v461 = vpack.c.b16 %v431, %v431
    %v462 = vpack.c.b16 %v432, %v432
    %v463 = vpack.c.b16 %v433, %v433
    %v464 = vpack.c.b16 %v434, %v434
    %vm489 = vcmask 588800
    %v491 = vsel %vm489, %v353, 0
    %vm493 = vcmask 1043456
    %v495 = vsel %vm493, %v459, 0
    %v498 = vsel %vm493, %v460, 0
    %v501 = vsel %vm493, %v461, 0
    %v504 = vsel %vm493, %v462, 0
    %v507 = vsel %vm493, %v463, 0
    %v510 = vsel %vm493, %v464, 0
    %512 = vmatprep.subr.bf16.mxu0 %v436
    %513 = vmatpush1.bf16.msra.mxu0 %v435
    %514 = vmatprep.subr.bf16.mxu0 %v442
    %515 = vmatpush1.bf16.msra.mxu0 %v441
    %516 = vmatprep.subr.bf16.mxu0 %v448
    %517 = vmatpush1.bf16.msra.mxu0 %v447
    %518 = vmatprep.subr.bf16.mxu0 %v454
    %519 = vmatpush1.bf16.msra.mxu0 %v453
    %520 = vmatprep.subr.bf16.mxu0 %v498
    %521 = vmatpush1.bf16.msra.mxu0 %v495
    %522 = vmatprep.subr.bf16.mxu0 0
    %523 = vmatpush1.bf16.msra.mxu0 0
    %524 = vmatprep.subr.bf16.mxu0 0
    %525 = vmatpush1.bf16.msra.mxu0 0
    %526 = vmatprep.subr.bf16.mxu0 0
    %527 = vmatpush1.bf16.msra.mxu0 0
    %528 = vmatprep.subr.bf16.mxu0 0
    %529 = vmatpush1.bf16.msra.mxu0 0
    %530 = vmatprep.subr.bf16.mxu0 0
    %531 = vmatpush1.bf16.msra.mxu0 0
    %532 = vmatprep.subr.bf16.mxu0 0
    %533 = vmatpush1.bf16.msra.mxu0 0
    %534 = vmatprep.subr.bf16.mxu0 0
    %535 = vmatpush1.bf16.msra.mxu0 0
    %536 = vmatprep.subr.bf16.mxu0 0
    %537 = vmatpush1.bf16.msra.mxu0 0
    %538 = vmatprep.subr.bf16.mxu0 0
    %539 = vmatpush1.bf16.msra.mxu0 0
    %540 = vmatprep.subr.bf16.mxu0 0
    %541 = vmatpush1.bf16.msra.mxu0 0
    %542 = vmatprep.subr.bf16.mxu0 0
    %543 = vmatpush1.bf16.msra.mxu0 0
    %544 = vmatprep.mubr.bf16.mxu0 0
    %545 = vmatmul.mubr.bf16.gmra.mrb[0].mxu0 %v491
    %v546 = vpop.f32.mrb[0].mxu0
    %v547 = vadd.f32 %v342, %v546
    %v548 = vpop.f32.mrb[0].mxu0
    %v549 = vadd.f32 %v342, %v548
    %v550 = vpop.f32.mrb[0].mxu0
    %v551 = vadd.f32 %v347, %v550
    %v552 = vpop.f32.mrb[0].mxu0
    %v553 = vadd.f32 %v347, %v552
    %554 = vdwg.mxu0
    %555 = vmatprep.subr.bf16.mxu0 %v438
    %556 = vmatpush1.bf16.msra.mxu0 %v437
    %557 = vmatprep.subr.bf16.mxu0 %v444
    %558 = vmatpush1.bf16.msra.mxu0 %v443
    %559 = vmatprep.subr.bf16.mxu0 %v450
    %560 = vmatpush1.bf16.msra.mxu0 %v449
    %561 = vmatprep.subr.bf16.mxu0 %v456
    %562 = vmatpush1.bf16.msra.mxu0 %v455
    %563 = vmatprep.subr.bf16.mxu0 %v504
    %564 = vmatpush1.bf16.msra.mxu0 %v501
    %565 = vmatprep.subr.bf16.mxu0 0
    %566 = vmatpush1.bf16.msra.mxu0 0
    %567 = vmatprep.subr.bf16.mxu0 0
    %568 = vmatpush1.bf16.msra.mxu0 0
    %569 = vmatprep.subr.bf16.mxu0 0
    %570 = vmatpush1.bf16.msra.mxu0 0
    %571 = vmatprep.subr.bf16.mxu0 0
    %572 = vmatpush1.bf16.msra.mxu0 0
    %573 = vmatprep.subr.bf16.mxu0 0
    %574 = vmatpush1.bf16.msra.mxu0 0
    %575 = vmatprep.subr.bf16.mxu0 0
    %576 = vmatpush1.bf16.msra.mxu0 0
    %577 = vmatprep.subr.bf16.mxu0 0
    %578 = vmatpush1.bf16.msra.mxu0 0
    %579 = vmatprep.subr.bf16.mxu0 0
    %580 = vmatpush1.bf16.msra.mxu0 0
    %581 = vmatprep.subr.bf16.mxu0 0
    %582 = vmatpush1.bf16.msra.mxu0 0
    %583 = vmatprep.subr.bf16.mxu0 0
    %584 = vmatpush1.bf16.msra.mxu0 0
    %585 = vmatprep.subr.bf16.mxu0 0
    %586 = vmatpush1.bf16.msra.mxu0 0
    %587 = vmatprep.mubr.bf16.mxu0 0
    %588 = vmatmul.mubr.bf16.gmra.mrb[0].mxu0 %v491
    %v589 = vpop.f32.mrb[0].mxu0
    %v590 = vadd.f32 %v342, %v589
    %v591 = vpop.f32.mrb[0].mxu0
    %v592 = vadd.f32 %v342, %v591
    %v593 = vpop.f32.mrb[0].mxu0
    %v594 = vadd.f32 %v347, %v593
    %v595 = vpop.f32.mrb[0].mxu0
    %v596 = vadd.f32 %v347, %v595
    %597 = vdwg.mxu0
    %598 = vmatprep.subr.bf16.mxu0 %v440
    %599 = vmatpush1.bf16.msra.mxu0 %v439
    %600 = vmatprep.subr.bf16.mxu0 %v446
    %601 = vmatpush1.bf16.msra.mxu0 %v445
    %602 = vmatprep.subr.bf16.mxu0 %v452
    %603 = vmatpush1.bf16.msra.mxu0 %v451
    %604 = vmatprep.subr.bf16.mxu0 %v458
    %605 = vmatpush1.bf16.msra.mxu0 %v457
    %606 = vmatprep.subr.bf16.mxu0 %v510
    %607 = vmatpush1.bf16.msra.mxu0 %v507
    %608 = vmatprep.subr.bf16.mxu0 0
    %609 = vmatpush1.bf16.msra.mxu0 0
    %610 = vmatprep.subr.bf16.mxu0 0
    %611 = vmatpush1.bf16.msra.mxu0 0
    %612 = vmatprep.subr.bf16.mxu0 0
    %613 = vmatpush1.bf16.msra.mxu0 0
    %614 = vmatprep.subr.bf16.mxu0 0
    %615 = vmatpush1.bf16.msra.mxu0 0
    %616 = vmatprep.subr.bf16.mxu0 0
    %617 = vmatpush1.bf16.msra.mxu0 0
    %618 = vmatprep.subr.bf16.mxu0 0
    %619 = vmatpush1.bf16.msra.mxu0 0
    %620 = vmatprep.subr.bf16.mxu0 0
    %621 = vmatpush1.bf16.msra.mxu0 0
    %622 = vmatprep.subr.bf16.mxu0 0
    %623 = vmatpush1.bf16.msra.mxu0 0
    %624 = vmatprep.subr.bf16.mxu0 0
    %625 = vmatpush1.bf16.msra.mxu0 0
    %626 = vmatprep.subr.bf16.mxu0 0
    %627 = vmatpush1.bf16.msra.mxu0 0
    %628 = vmatprep.subr.bf16.mxu0 0
    %629 = vmatpush1.bf16.msra.mxu0 0
    %630 = vmatprep.mubr.bf16.mxu0 0
    %631 = vmatmul.mubr.bf16.gmra.mrb[0].mxu0 %v491
    %v632 = vpop.f32.mrb[0].mxu0
    %v633 = vadd.f32 %v342, %v632
    %v634 = vpop.f32.mrb[0].mxu0
    %v635 = vadd.f32 %v342, %v634
    %v636 = vpop.f32.mrb[0].mxu0
    %v637 = vadd.f32 %v347, %v636
    %v638 = vpop.f32.mrb[0].mxu0
    %v639 = vadd.f32 %v347, %v638
    %640 = vdwg.mxu0
    %v641 = vmax.f32 %v547, -30.0
    %v642 = vmax.f32 %v549, -30.0
    %v643 = vmax.f32 %v590, -30.0
    %v644 = vmax.f32 %v592, -30.0
    %v645 = vmax.f32 %v633, -30.0
    %v646 = vmax.f32 %v635, -30.0
    %v647 = vmax.f32 %v551, -30.0
    %v648 = vmax.f32 %v553, -30.0
    %v649 = vmax.f32 %v594, -30.0
    %v650 = vmax.f32 %v596, -30.0
    %v651 = vmax.f32 %v637, -30.0
    %v652 = vmax.f32 %v639, -30.0
    %v653 = vsub.f32 0.0, %v641
    %v654 = vsub.f32 0.0, %v642
    %v655 = vsub.f32 0.0, %v643
    %v656 = vsub.f32 0.0, %v644
    %v657 = vsub.f32 0.0, %v645
    %v658 = vsub.f32 0.0, %v646
    %v659 = vsub.f32 0.0, %v647
    %v660 = vsub.f32 0.0, %v648
    %v661 = vsub.f32 0.0, %v649
    %v662 = vsub.f32 0.0, %v650
    %v663 = vsub.f32 0.0, %v651
    %v664 = vsub.f32 0.0, %v652
    %v665 = vmul.f32 %v653, 1.442695
    %v666 = vpow.pop %v665
    %v667 = vmul.f32 %v654, 1.442695
    %v668 = vpow.pop %v667
    %v669 = vmul.f32 %v655, 1.442695
    %v670 = vpow.pop %v669
    %v671 = vmul.f32 %v656, 1.442695
    %v672 = vpow.pop %v671
    %v673 = vmul.f32 %v657, 1.442695
    %v674 = vpow.pop %v673
    %v675 = vmul.f32 %v658, 1.442695
    %v676 = vpow.pop %v675
    %v677 = vmul.f32 %v659, 1.442695
    %v678 = vpow.pop %v677
    %v679 = vmul.f32 %v660, 1.442695
    %v680 = vpow.pop %v679
    %v681 = vmul.f32 %v661, 1.442695
    %v682 = vpow.pop %v681
    %v683 = vmul.f32 %v662, 1.442695
    %v684 = vpow.pop %v683
    %v685 = vmul.f32 %v663, 1.442695
    %v686 = vpow.pop %v685
    %v687 = vmul.f32 %v664, 1.442695
    %v688 = vpow.pop %v687
    %v689 = vadd.f32 %v666, 1.0
    %v690 = vadd.f32 %v668, 1.0
    %v691 = vadd.f32 %v670, 1.0
    %v692 = vadd.f32 %v672, 1.0
    %v693 = vadd.f32 %v674, 1.0
    %v694 = vadd.f32 %v676, 1.0
    %v695 = vadd.f32 %v678, 1.0
    %v696 = vadd.f32 %v680, 1.0
    %v697 = vadd.f32 %v682, 1.0
    %v698 = vadd.f32 %v684, 1.0
    %v699 = vadd.f32 %v686, 1.0
    %v700 = vadd.f32 %v688, 1.0
    %v701 = vrcp.pop %v689
    %v702 = vrcp.pop %v690
    %v703 = vrcp.pop %v691
    %v704 = vrcp.pop %v692
    %v705 = vrcp.pop %v693
    %v706 = vrcp.pop %v694
    %v707 = vrcp.pop %v695
    %v708 = vrcp.pop %v696
    %v709 = vrcp.pop %v697
    %v710 = vrcp.pop %v698
    %v711 = vrcp.pop %v699
    %v712 = vrcp.pop %v700
    %v713 = vmul.f32 %v547, %v701
    %v714 = vmul.f32 %v549, %v702
    %v715 = vmul.f32 %v590, %v703
    %v716 = vmul.f32 %v592, %v704
    %v717 = vmul.f32 %v633, %v705
    %v718 = vmul.f32 %v635, %v706
    %v719 = vmul.f32 %v551, %v707
    %v720 = vmul.f32 %v553, %v708
    %v721 = vmul.f32 %v594, %v709
    %v722 = vmul.f32 %v596, %v710
    %v723 = vmul.f32 %v637, %v711
    %v724 = vmul.f32 %v639, %v712
    %v725 = vld [vmem:[%s6] sm:$0x7]
    %v727 = vlaneseq
    %v728 = vshrl.u32 %v727, 7
    %v729 = vsub.s32 0, %v728
    %v730 = vrot.slane %v725, %v729
    %v731 = vlaneseq
    %v732 = vshrl.u32 %v731, 7
    %v733 = vsub.s32 1, %v732
    %v734 = vrot.slane %v725, %v733
    %v735 = vlaneseq
    %v736 = vshrl.u32 %v735, 7
    %v737 = vsub.s32 2, %v736
    %v738 = vrot.slane %v725, %v737
    %v742 = vmul.f32 %v713, %v730
    %v743 = vmul.f32 %v714, %v734
    %v744 = vmul.f32 %v715, %v738
    %v745 = vmul.f32 %v719, %v730
    %v746 = vmul.f32 %v720, %v734
    %v747 = vmul.f32 %v721, %v738
    %v748 = vadd.f32 %v742, %v743
    %v749 = vadd.f32 %v748, %v744
    %750 = vadd.xlane.f32.xlu0 %v749
    %v751 = vpop.xlane.xlu0 %750
    %v752 = vadd.f32 %v745, %v746
    %v753 = vadd.f32 %v752, %v747
    %754 = vadd.xlane.f32.xlu0 %v753
    %v755 = vpop.xlane.xlu0 %754
    %v756 = vld [vmem:[%s3] sm:$0xf]
    %vm757 = vcmask 130048
    %v759 = vsel %vm757, %v756, 0
    %761 = vmatprep.subr.mxu0 0.0
    %762 = vmatpush1.msra.mxu0 %v751
    %763 = vmatprep.subr.mxu0 0.0
    %764 = vmatpush1.msra.mxu0 %v755
    %765 = vmatprep.subr.mxu0 0.0
    %766 = vmatpush1.msra.mxu0 0.0
    %767 = vmatprep.subr.mxu0 0.0
    %768 = vmatpush1.msra.mxu0 0.0
    %769 = vmatprep.subr.mxu0 0.0
    %770 = vmatpush1.msra.mxu0 0.0
    %771 = vmatprep.subr.mxu0 0.0
    %772 = vmatpush1.msra.mxu0 0.0
    %773 = vmatprep.subr.mxu0 0.0
    %774 = vmatpush1.msra.mxu0 0.0
    %775 = vmatprep.subr.mxu0 0.0
    %776 = vmatpush1.msra.mxu0 0.0
    %777 = vmatprep.subr.mxu0 0.0
    %778 = vmatpush1.msra.mxu0 0.0
    %779 = vmatprep.subr.mxu0 0.0
    %780 = vmatpush1.msra.mxu0 0.0
    %781 = vmatprep.subr.mxu0 0.0
    %782 = vmatpush1.msra.mxu0 0.0
    %783 = vmatprep.subr.mxu0 0.0
    %784 = vmatpush1.msra.mxu0 0.0
    %785 = vmatprep.subr.mxu0 0.0
    %786 = vmatpush1.msra.mxu0 0.0
    %787 = vmatprep.subr.mxu0 0.0
    %788 = vmatpush1.msra.mxu0 0.0
    %789 = vmatprep.subr.mxu0 0.0
    %790 = vmatpush1.msra.mxu0 0.0
    %791 = vmatprep.subr.mxu0 0.0
    %792 = vmatpush1.msra.mxu0 0.0
    %793 = vmatprep.subr.mxu0 0.0
    %794 = vmatpush1.msra.mxu0 0.0
    %795 = vmatprep.subr.mxu0 0.0
    %796 = vmatpush1.msra.mxu0 0.0
    %797 = vmatprep.subr.mxu0 0.0
    %798 = vmatpush1.msra.mxu0 0.0
    %799 = vmatprep.subr.mxu0 0.0
    %800 = vmatpush1.msra.mxu0 0.0
    %801 = vmatprep.subr.mxu0 0.0
    %802 = vmatpush1.msra.mxu0 0.0
    %803 = vmatprep.subr.mxu0 0.0
    %804 = vmatpush1.msra.mxu0 0.0
    %805 = vmatprep.subr.mxu0 0.0
    %806 = vmatpush1.msra.mxu0 0.0
    %807 = vmatprep.subr.mxu0 0.0
    %808 = vmatpush1.msra.mxu0 0.0
    %809 = vmatprep.subr.mxu0 0.0
    %810 = vmatpush1.msra.mxu0 0.0
    %811 = vmatprep.subr.mxu0 0.0
    %812 = vmatpush1.msra.mxu0 0.0
    %813 = vmatprep.subr.mxu0 0.0
    %814 = vmatpush1.msra.mxu0 0.0
    %815 = vmatprep.subr.mxu0 0.0
    %816 = vmatpush1.msra.mxu0 0.0
    %817 = vmatprep.subr.mxu0 0.0
    %818 = vmatpush1.msra.mxu0 0.0
    %819 = vmatprep.subr.mxu0 0.0
    %820 = vmatpush1.msra.mxu0 0.0
    %821 = vmatprep.subr.mxu0 0.0
    %822 = vmatpush1.msra.mxu0 0.0
    %823 = vmatprep.subr.mxu0 0.0
    %824 = vmatpush1.msra.mxu0 0.0
    %825 = vmatprep.mubr.f32.mxu0 0.0
    %826 = vmatmul.mubr.f32.gmra.mrb[0].mxu0 %v759
    %v827 = vpop.f32.mrb[0].mxu0
    %v828 = vadd.f32 %v306, %v827
    %v829 = vpop.f32.mrb[0].mxu0
    %830 = vdwg.mxu0
    %v831 = vmax.f32 %v828, 0.0
    %v832 = vld [vmem:[%s4] sm:$0xff]
    %v833 = vld [vmem:[%s4 + $0x8] sm:$0xff]
    %vm834 = vcmask 31744
    %v836 = vsel %vm834, %v832, 0
    %v839 = vsel %vm834, %v833, 0
    %v842 = vsel %vm493, %v831, 0
    %844 = vmatprep.subr.mxu0 0.0
    %845 = vmatpush1.msra.mxu0 %v842
    %846 = vmatprep.subr.mxu0 0.0
    %847 = vmatpush1.msra.mxu0 0.0
    %848 = vmatprep.subr.mxu0 0.0
    %849 = vmatpush1.msra.mxu0 0.0
    %850 = vmatprep.subr.mxu0 0.0
    %851 = vmatpush1.msra.mxu0 0.0
    %852 = vmatprep.subr.mxu0 0.0
    %853 = vmatpush1.msra.mxu0 0.0
    %854 = vmatprep.subr.mxu0 0.0
    %855 = vmatpush1.msra.mxu0 0.0
    %856 = vmatprep.subr.mxu0 0.0
    %857 = vmatpush1.msra.mxu0 0.0
    %858 = vmatprep.subr.mxu0 0.0
    %859 = vmatpush1.msra.mxu0 0.0
    %860 = vmatprep.subr.mxu0 0.0
    %861 = vmatpush1.msra.mxu0 0.0
    %862 = vmatprep.subr.mxu0 0.0
    %863 = vmatpush1.msra.mxu0 0.0
    %864 = vmatprep.subr.mxu0 0.0
    %865 = vmatpush1.msra.mxu0 0.0
    %866 = vmatprep.subr.mxu0 0.0
    %867 = vmatpush1.msra.mxu0 0.0
    %868 = vmatprep.subr.mxu0 0.0
    %869 = vmatpush1.msra.mxu0 0.0
    %870 = vmatprep.subr.mxu0 0.0
    %871 = vmatpush1.msra.mxu0 0.0
    %872 = vmatprep.subr.mxu0 0.0
    %873 = vmatpush1.msra.mxu0 0.0
    %874 = vmatprep.subr.mxu0 0.0
    %875 = vmatpush1.msra.mxu0 0.0
    %876 = vmatprep.subr.mxu0 0.0
    %877 = vmatpush1.msra.mxu0 0.0
    %878 = vmatprep.subr.mxu0 0.0
    %879 = vmatpush1.msra.mxu0 0.0
    %880 = vmatprep.subr.mxu0 0.0
    %881 = vmatpush1.msra.mxu0 0.0
    %882 = vmatprep.subr.mxu0 0.0
    %883 = vmatpush1.msra.mxu0 0.0
    %884 = vmatprep.subr.mxu0 0.0
    %885 = vmatpush1.msra.mxu0 0.0
    %886 = vmatprep.subr.mxu0 0.0
    %887 = vmatpush1.msra.mxu0 0.0
    %888 = vmatprep.subr.mxu0 0.0
    %889 = vmatpush1.msra.mxu0 0.0
    %890 = vmatprep.subr.mxu0 0.0
    %891 = vmatpush1.msra.mxu0 0.0
    %892 = vmatprep.subr.mxu0 0.0
    %893 = vmatpush1.msra.mxu0 0.0
    %894 = vmatprep.subr.mxu0 0.0
    %895 = vmatpush1.msra.mxu0 0.0
    %896 = vmatprep.subr.mxu0 0.0
    %897 = vmatpush1.msra.mxu0 0.0
    %898 = vmatprep.subr.mxu0 0.0
    %899 = vmatpush1.msra.mxu0 0.0
    %900 = vmatprep.subr.mxu0 0.0
    %901 = vmatpush1.msra.mxu0 0.0
    %902 = vmatprep.subr.mxu0 0.0
    %903 = vmatpush1.msra.mxu0 0.0
    %904 = vmatprep.subr.mxu0 0.0
    %905 = vmatpush1.msra.mxu0 0.0
    %906 = vmatprep.subr.mxu0 0.0
    %907 = vmatpush1.msra.mxu0 0.0
    %908 = vmatprep.mubr.f32.mxu0 0.0
    %909 = vmatmul.mubr.f32.gmra.mrb[0].mxu0 %v836
    %v910 = vpop.f32.mrb[0].mxu0
    %v911 = vadd.f32 %v307, %v910
    %v912 = vpop.f32.mrb[0].mxu0
    %913 = vmatprep.mubr.f32.mxu0 0.0
    %914 = vmatmul.mubr.f32.gmra.mrb[0].mxu0 %v839
    %v915 = vpop.f32.mrb[0].mxu0
    %v916 = vadd.f32 %v308, %v915
    %v917 = vpop.f32.mrb[0].mxu0
    %918 = vdwg.mxu0
    %v919 = vmax.f32 %v911, -30.0
    %v920 = vmax.f32 %v916, -30.0
    %v921 = vsub.f32 0.0, %v919
    %v922 = vsub.f32 0.0, %v920
    %v923 = vmul.f32 %v921, 1.442695
    %v924 = vpow.pop %v923
    %v925 = vmul.f32 %v922, 1.442695
    %v926 = vpow.pop %v925
    %v927 = vadd.f32 %v924, 1.0
    %v928 = vadd.f32 %v926, 1.0
    %v929 = vrcp.pop %v927
    %v930 = vmul.f32 1.0, %v929
    %v931 = vrcp.pop %v928
    %v932 = vmul.f32 1.0, %v931
    %934 = vset.pattern.permute.xlu0 0
    %935 = vperm.xlu0 %934, %v930
    %v936 = vpop.permute.xlu0 %935
    %939 = vset.pattern.permute.xlu0 0
    %940 = vperm.xlu0 %939, %v932
    %v941 = vpop.permute.xlu0 %940
    %v943 = vmul.f32 %v713, %v936
    %v944 = vmul.f32 %v714, %v936
    %v945 = vmul.f32 %v715, %v936
    %v946 = vmul.f32 %v719, %v941
    %v947 = vmul.f32 %v720, %v941
    %v948 = vmul.f32 %v721, %v941
    %v949 = vpack.c.bf16 %v946, %v943
    %v950 = vpack.c.bf16 %v947, %v944
    %v951 = vpack.c.bf16 %v948, %v945
    %952 = vst [vmem:[#allocation3] sm:$0xff] %v949
    %953 = vst [vmem:[#allocation3 + $0x8] sm:$0xff] %v950
    %954 = vst [vmem:[#allocation3 + $0x10] sm:$0xff] %v951
    %v955 = vld [vmem:[%s6] sm:$0x7]
    %v957 = vlaneseq
    %v958 = vshrl.u32 %v957, 7
    %v959 = vsub.s32 0, %v958
    %v960 = vrot.slane %v955, %v959
    %v961 = vlaneseq
    %v962 = vshrl.u32 %v961, 7
    %v963 = vsub.s32 1, %v962
    %v964 = vrot.slane %v955, %v963
    %v965 = vlaneseq
    %v966 = vshrl.u32 %v965, 7
    %v967 = vsub.s32 2, %v966
    %v968 = vrot.slane %v955, %v967
    %v972 = vmul.f32 %v716, %v960
    %v973 = vmul.f32 %v717, %v964
    %v974 = vmul.f32 %v718, %v968
    %v975 = vmul.f32 %v722, %v960
    %v976 = vmul.f32 %v723, %v964
    %v977 = vmul.f32 %v724, %v968
    %v978 = vadd.f32 %v972, %v973
    %v979 = vadd.f32 %v978, %v974
    %980 = vadd.xlane.f32.xlu0 %v979
    %v981 = vpop.xlane.xlu0 %980
    %v982 = vadd.f32 %v975, %v976
    %v983 = vadd.f32 %v982, %v977
    %984 = vadd.xlane.f32.xlu0 %v983
    %v985 = vpop.xlane.xlu0 %984
    %v986 = vld [vmem:[%s3] sm:$0xf]
    %v988 = vsel %vm757, %v986, 0
    %990 = vmatprep.subr.mxu0 0.0
    %991 = vmatpush1.msra.mxu0 %v981
    %992 = vmatprep.subr.mxu0 0.0
    %993 = vmatpush1.msra.mxu0 %v985
    %994 = vmatprep.subr.mxu0 0.0
    %995 = vmatpush1.msra.mxu0 0.0
    %996 = vmatprep.subr.mxu0 0.0
    %997 = vmatpush1.msra.mxu0 0.0
    %998 = vmatprep.subr.mxu0 0.0
    %999 = vmatpush1.msra.mxu0 0.0
    %1000 = vmatprep.subr.mxu0 0.0
    %1001 = vmatpush1.msra.mxu0 0.0
    %1002 = vmatprep.subr.mxu0 0.0
    %1003 = vmatpush1.msra.mxu0 0.0
    %1004 = vmatprep.subr.mxu0 0.0
    %1005 = vmatpush1.msra.mxu0 0.0
    %1006 = vmatprep.subr.mxu0 0.0
    %1007 = vmatpush1.msra.mxu0 0.0
    %1008 = vmatprep.subr.mxu0 0.0
    %1009 = vmatpush1.msra.mxu0 0.0
    %1010 = vmatprep.subr.mxu0 0.0
    %1011 = vmatpush1.msra.mxu0 0.0
    %1012 = vmatprep.subr.mxu0 0.0
    %1013 = vmatpush1.msra.mxu0 0.0
    %1014 = vmatprep.subr.mxu0 0.0
    %1015 = vmatpush1.msra.mxu0 0.0
    %1016 = vmatprep.subr.mxu0 0.0
    %1017 = vmatpush1.msra.mxu0 0.0
    %1018 = vmatprep.subr.mxu0 0.0
    %1019 = vmatpush1.msra.mxu0 0.0
    %1020 = vmatprep.subr.mxu0 0.0
    %1021 = vmatpush1.msra.mxu0 0.0
    %1022 = vmatprep.subr.mxu0 0.0
    %1023 = vmatpush1.msra.mxu0 0.0
    %1024 = vmatprep.subr.mxu0 0.0
    %1025 = vmatpush1.msra.mxu0 0.0
    %1026 = vmatprep.subr.mxu0 0.0
    %1027 = vmatpush1.msra.mxu0 0.0
    %1028 = vmatprep.subr.mxu0 0.0
    %1029 = vmatpush1.msra.mxu0 0.0
    %1030 = vmatprep.subr.mxu0 0.0
    %1031 = vmatpush1.msra.mxu0 0.0
    %1032 = vmatprep.subr.mxu0 0.0
    %1033 = vmatpush1.msra.mxu0 0.0
    %1034 = vmatprep.subr.mxu0 0.0
    %1035 = vmatpush1.msra.mxu0 0.0
    %1036 = vmatprep.subr.mxu0 0.0
    %1037 = vmatpush1.msra.mxu0 0.0
    %1038 = vmatprep.subr.mxu0 0.0
    %1039 = vmatpush1.msra.mxu0 0.0
    %1040 = vmatprep.subr.mxu0 0.0
    %1041 = vmatpush1.msra.mxu0 0.0
    %1042 = vmatprep.subr.mxu0 0.0
    %1043 = vmatpush1.msra.mxu0 0.0
    %1044 = vmatprep.subr.mxu0 0.0
    %1045 = vmatpush1.msra.mxu0 0.0
    %1046 = vmatprep.subr.mxu0 0.0
    %1047 = vmatpush1.msra.mxu0 0.0
    %1048 = vmatprep.subr.mxu0 0.0
    %1049 = vmatpush1.msra.mxu0 0.0
    %1050 = vmatprep.subr.mxu0 0.0
    %1051 = vmatpush1.msra.mxu0 0.0
    %1052 = vmatprep.subr.mxu0 0.0
    %1053 = vmatpush1.msra.mxu0 0.0
    %1054 = vmatprep.mubr.f32.mxu0 0.0
    %1055 = vmatmul.mubr.f32.gmra.mrb[0].mxu0 %v988
    %v1056 = vpop.f32.mrb[0].mxu0
    %v1057 = vadd.f32 %v306, %v1056
    %v1058 = vpop.f32.mrb[0].mxu0
    %1059 = vdwg.mxu0
    %v1060 = vmax.f32 %v1057, 0.0
    %v1061 = vld [vmem:[%s4] sm:$0xff]
    %v1062 = vld [vmem:[%s4 + $0x8] sm:$0xff]
    %v1064 = vsel %vm834, %v1061, 0
    %v1067 = vsel %vm834, %v1062, 0
    %v1070 = vsel %vm493, %v1060, 0
    %1072 = vmatprep.subr.mxu0 0.0
    %1073 = vmatpush1.msra.mxu0 %v1070
    %1074 = vmatprep.subr.mxu0 0.0
    %1075 = vmatpush1.msra.mxu0 0.0
    %1076 = vmatprep.subr.mxu0 0.0
    %1077 = vmatpush1.msra.mxu0 0.0
    %1078 = vmatprep.subr.mxu0 0.0
    %1079 = vmatpush1.msra.mxu0 0.0
    %1080 = vmatprep.subr.mxu0 0.0
    %1081 = vmatpush1.msra.mxu0 0.0
    %1082 = vmatprep.subr.mxu0 0.0
    %1083 = vmatpush1.msra.mxu0 0.0
    %1084 = vmatprep.subr.mxu0 0.0
    %1085 = vmatpush1.msra.mxu0 0.0
    %1086 = vmatprep.subr.mxu0 0.0
    %1087 = vmatpush1.msra.mxu0 0.0
    %1088 = vmatprep.subr.mxu0 0.0
    %1089 = vmatpush1.msra.mxu0 0.0
    %1090 = vmatprep.subr.mxu0 0.0
    %1091 = vmatpush1.msra.mxu0 0.0
    %1092 = vmatprep.subr.mxu0 0.0
    %1093 = vmatpush1.msra.mxu0 0.0
    %1094 = vmatprep.subr.mxu0 0.0
    %1095 = vmatpush1.msra.mxu0 0.0
    %1096 = vmatprep.subr.mxu0 0.0
    %1097 = vmatpush1.msra.mxu0 0.0
    %1098 = vmatprep.subr.mxu0 0.0
    %1099 = vmatpush1.msra.mxu0 0.0
    %1100 = vmatprep.subr.mxu0 0.0
    %1101 = vmatpush1.msra.mxu0 0.0
    %1102 = vmatprep.subr.mxu0 0.0
    %1103 = vmatpush1.msra.mxu0 0.0
    %1104 = vmatprep.subr.mxu0 0.0
    %1105 = vmatpush1.msra.mxu0 0.0
    %1106 = vmatprep.subr.mxu0 0.0
    %1107 = vmatpush1.msra.mxu0 0.0
    %1108 = vmatprep.subr.mxu0 0.0
    %1109 = vmatpush1.msra.mxu0 0.0
    %1110 = vmatprep.subr.mxu0 0.0
    %1111 = vmatpush1.msra.mxu0 0.0
    %1112 = vmatprep.subr.mxu0 0.0
    %1113 = vmatpush1.msra.mxu0 0.0
    %1114 = vmatprep.subr.mxu0 0.0
    %1115 = vmatpush1.msra.mxu0 0.0
    %1116 = vmatprep.subr.mxu0 0.0
    %1117 = vmatpush1.msra.mxu0 0.0
    %1118 = vmatprep.subr.mxu0 0.0
    %1119 = vmatpush1.msra.mxu0 0.0
    %1120 = vmatprep.subr.mxu0 0.0
    %1121 = vmatpush1.msra.mxu0 0.0
    %1122 = vmatprep.subr.mxu0 0.0
    %1123 = vmatpush1.msra.mxu0 0.0
    %1124 = vmatprep.subr.mxu0 0.0
    %1125 = vmatpush1.msra.mxu0 0.0
    %1126 = vmatprep.subr.mxu0 0.0
    %1127 = vmatpush1.msra.mxu0 0.0
    %1128 = vmatprep.subr.mxu0 0.0
    %1129 = vmatpush1.msra.mxu0 0.0
    %1130 = vmatprep.subr.mxu0 0.0
    %1131 = vmatpush1.msra.mxu0 0.0
    %1132 = vmatprep.subr.mxu0 0.0
    %1133 = vmatpush1.msra.mxu0 0.0
    %1134 = vmatprep.subr.mxu0 0.0
    %1135 = vmatpush1.msra.mxu0 0.0
    %1136 = vmatprep.mubr.f32.mxu0 0.0
    %1137 = vmatmul.mubr.f32.gmra.mrb[0].mxu0 %v1064
    %v1138 = vpop.f32.mrb[0].mxu0
    %v1139 = vadd.f32 %v307, %v1138
    %v1140 = vpop.f32.mrb[0].mxu0
    %1141 = vmatprep.mubr.f32.mxu0 0.0
    %1142 = vmatmul.mubr.f32.gmra.mrb[0].mxu0 %v1067
    %v1143 = vpop.f32.mrb[0].mxu0
    %v1144 = vadd.f32 %v308, %v1143
    %v1145 = vpop.f32.mrb[0].mxu0
    %1146 = vdwg.mxu0
    %v1147 = vmax.f32 %v1139, -30.0
    %v1148 = vmax.f32 %v1144, -30.0
    %v1149 = vsub.f32 0.0, %v1147
    %v1150 = vsub.f32 0.0, %v1148
    %v1151 = vmul.f32 %v1149, 1.442695
    %v1152 = vpow.pop %v1151
    %v1153 = vmul.f32 %v1150, 1.442695
    %v1154 = vpow.pop %v1153
    %v1155 = vadd.f32 %v1152, 1.0
    %v1156 = vadd.f32 %v1154, 1.0
    %v1157 = vrcp.pop %v1155
    %v1158 = vmul.f32 1.0, %v1157
    %v1159 = vrcp.pop %v1156
    %v1160 = vmul.f32 1.0, %v1159
    %1162 = vset.pattern.permute.xlu0 0
    %1163 = vperm.xlu0 %1162, %v1158
    %v1164 = vpop.permute.xlu0 %1163
    %1167 = vset.pattern.permute.xlu0 0
    %1168 = vperm.xlu0 %1167, %v1160
    %v1169 = vpop.permute.xlu0 %1168
    %v1171 = vmul.f32 %v716, %v1164
    %v1172 = vmul.f32 %v717, %v1164
    %v1173 = vmul.f32 %v718, %v1164
    %v1174 = vmul.f32 %v722, %v1169
    %v1175 = vmul.f32 %v723, %v1169
    %v1176 = vmul.f32 %v724, %v1169
    %v1177 = vpack.c.bf16 %v1174, %v1171
    %v1178 = vpack.c.bf16 %v1175, %v1172
    %v1179 = vpack.c.bf16 %v1176, %v1173
    %1180 = vst [vmem:[#allocation3 + $0x18] sm:$0xff] %v1177
    %1181 = vst [vmem:[#allocation3 + $0x20] sm:$0xff] %v1178
    %1182 = vst [vmem:[#allocation3 + $0x28] sm:$0xff] %v1179
    %v1183 = vld [vmem:[#allocation4] sm:$0x3]
    %v1184 = vld [vmem:[#allocation3] sm:$0xff]
    %v1185 = vld [vmem:[#allocation3 + $0x8] sm:$0xff]
    %v1186 = vld [vmem:[#allocation3 + $0x10] sm:$0xff]
    %v1187 = vld [vmem:[#allocation3 + $0x18] sm:$0xff]
    %v1188 = vld [vmem:[#allocation3 + $0x20] sm:$0xff]
    %v1189 = vld [vmem:[#allocation3 + $0x28] sm:$0xff]
    %1191 = vset.pattern.permute.xlu0 0
    %1192 = vperm.xlu0 %1191, %v309
    %v1193 = vpop.permute.xlu0 %1192
    %v1196 = vsel %vm757, %v1183, 0
    %1198 = vmatprep.subr.bf16.mxu0 %v1185
    %1199 = vmatpush1.bf16.msra.mxu0 %v1184
    %1200 = vmatprep.subr.bf16.mxu0 0
    %1201 = vmatpush1.bf16.msra.mxu0 0
    %1202 = vmatprep.subr.bf16.mxu0 0
    %1203 = vmatpush1.bf16.msra.mxu0 0
    %1204 = vmatprep.subr.bf16.mxu0 0
    %1205 = vmatpush1.bf16.msra.mxu0 0
    %1206 = vmatprep.subr.bf16.mxu0 0
    %1207 = vmatpush1.bf16.msra.mxu0 0
    %1208 = vmatprep.subr.bf16.mxu0 0
    %1209 = vmatpush1.bf16.msra.mxu0 0
    %1210 = vmatprep.subr.bf16.mxu0 0
    %1211 = vmatpush1.bf16.msra.mxu0 0
    %1212 = vmatprep.subr.bf16.mxu0 0
    %1213 = vmatpush1.bf16.msra.mxu0 0
    %1214 = vmatprep.subr.bf16.mxu0 0
    %1215 = vmatpush1.bf16.msra.mxu0 0
    %1216 = vmatprep.subr.bf16.mxu0 0
    %1217 = vmatpush1.bf16.msra.mxu0 0
    %1218 = vmatprep.subr.bf16.mxu0 0
    %1219 = vmatpush1.bf16.msra.mxu0 0
    %1220 = vmatprep.subr.bf16.mxu0 0
    %1221 = vmatpush1.bf16.msra.mxu0 0
    %1222 = vmatprep.subr.bf16.mxu0 0
    %1223 = vmatpush1.bf16.msra.mxu0 0
    %1224 = vmatprep.subr.bf16.mxu0 0
    %1225 = vmatpush1.bf16.msra.mxu0 0
    %1226 = vmatprep.subr.bf16.mxu0 0
    %1227 = vmatpush1.bf16.msra.mxu0 0
    %1228 = vmatprep.subr.bf16.mxu0 0
    %1229 = vmatpush1.bf16.msra.mxu0 0
    %1230 = vmatprep.mubr.bf16.mxu0 0
    %1231 = vmatmul.mubr.bf16.gmra.mrb[0].mxu0 %v1196
    %v1232 = vpop.f32.mrb[0].mxu0
    %v1233 = vadd.f32 %v1193, %v1232
    %v1234 = vpop.f32.mrb[0].mxu0
    %v1235 = vadd.f32 %v1193, %v1234
    %v1236 = vpop.f32.mrb[0].mxu0
    %v1237 = vpop.f32.mrb[0].mxu0
    %1238 = vdwg.mxu0
    %1239 = vmatprep.subr.bf16.mxu0 %v1187
    %1240 = vmatpush1.bf16.msra.mxu0 %v1186
    %1241 = vmatprep.subr.bf16.mxu0 0
    %1242 = vmatpush1.bf16.msra.mxu0 0
    %1243 = vmatprep.subr.bf16.mxu0 0
    %1244 = vmatpush1.bf16.msra.mxu0 0
    %1245 = vmatprep.subr.bf16.mxu0 0
    %1246 = vmatpush1.bf16.msra.mxu0 0
    %1247 = vmatprep.subr.bf16.mxu0 0
    %1248 = vmatpush1.bf16.msra.mxu0 0
    %1249 = vmatprep.subr.bf16.mxu0 0
    %1250 = vmatpush1.bf16.msra.mxu0 0
    %1251 = vmatprep.subr.bf16.mxu0 0
    %1252 = vmatpush1.bf16.msra.mxu0 0
    %1253 = vmatprep.subr.bf16.mxu0 0
    %1254 = vmatpush1.bf16.msra.mxu0 0
    %1255 = vmatprep.subr.bf16.mxu0 0
    %1256 = vmatpush1.bf16.msra.mxu0 0
    %1257 = vmatprep.subr.bf16.mxu0 0
    %1258 = vmatpush1.bf16.msra.mxu0 0
    %1259 = vmatprep.subr.bf16.mxu0 0
    %1260 = vmatpush1.bf16.msra.mxu0 0
    %1261 = vmatprep.subr.bf16.mxu0 0
    %1262 = vmatpush1.bf16.msra.mxu0 0
    %1263 = vmatprep.subr.bf16.mxu0 0
    %1264 = vmatpush1.bf16.msra.mxu0 0
    %1265 = vmatprep.subr.bf16.mxu0 0
    %1266 = vmatpush1.bf16.msra.mxu0 0
    %1267 = vmatprep.subr.bf16.mxu0 0
    %1268 = vmatpush1.bf16.msra.mxu0 0
    %1269 = vmatprep.subr.bf16.mxu0 0
    %1270 = vmatpush1.bf16.msra.mxu0 0
    %1271 = vmatprep.mubr.bf16.mxu0 0
    %1272 = vmatmul.mubr.bf16.gmra.mrb[0].mxu0 %v1196
    %v1273 = vpop.f32.mrb[0].mxu0
    %v1274 = vadd.f32 %v1193, %v1273
    %v1275 = vpop.f32.mrb[0].mxu0
    %v1276 = vadd.f32 %v1193, %v1275
    %v1277 = vpop.f32.mrb[0].mxu0
    %v1278 = vpop.f32.mrb[0].mxu0
    %1279 = vdwg.mxu0
    %1280 = vmatprep.subr.bf16.mxu0 %v1189
    %1281 = vmatpush1.bf16.msra.mxu0 %v1188
    %1282 = vmatprep.subr.bf16.mxu0 0
    %1283 = vmatpush1.bf16.msra.mxu0 0
    %1284 = vmatprep.subr.bf16.mxu0 0
    %1285 = vmatpush1.bf16.msra.mxu0 0
    %1286 = vmatprep.subr.bf16.mxu0 0
    %1287 = vmatpush1.bf16.msra.mxu0 0
    %1288 = vmatprep.subr.bf16.mxu0 0
    %1289 = vmatpush1.bf16.msra.mxu0 0
    %1290 = vmatprep.subr.bf16.mxu0 0
    %1291 = vmatpush1.bf16.msra.mxu0 0
    %1292 = vmatprep.subr.bf16.mxu0 0
    %1293 = vmatpush1.bf16.msra.mxu0 0
    %1294 = vmatprep.subr.bf16.mxu0 0
    %1295 = vmatpush1.bf16.msra.mxu0 0
    %1296 = vmatprep.subr.bf16.mxu0 0
    %1297 = vmatpush1.bf16.msra.mxu0 0
    %1298 = vmatprep.subr.bf16.mxu0 0
    %1299 = vmatpush1.bf16.msra.mxu0 0
    %1300 = vmatprep.subr.bf16.mxu0 0
    %1301 = vmatpush1.bf16.msra.mxu0 0
    %1302 = vmatprep.subr.bf16.mxu0 0
    %1303 = vmatpush1.bf16.msra.mxu0 0
    %1304 = vmatprep.subr.bf16.mxu0 0
    %1305 = vmatpush1.bf16.msra.mxu0 0
    %1306 = vmatprep.subr.bf16.mxu0 0
    %1307 = vmatpush1.bf16.msra.mxu0 0
    %1308 = vmatprep.subr.bf16.mxu0 0
    %1309 = vmatpush1.bf16.msra.mxu0 0
    %1310 = vmatprep.subr.bf16.mxu0 0
    %1311 = vmatpush1.bf16.msra.mxu0 0
    %1312 = vmatprep.mubr.bf16.mxu0 0
    %1313 = vmatmul.mubr.bf16.gmra.mrb[0].mxu0 %v1196
    %v1314 = vpop.f32.mrb[0].mxu0
    %v1315 = vadd.f32 %v1193, %v1314
    %v1316 = vpop.f32.mrb[0].mxu0
    %v1317 = vadd.f32 %v1193, %v1316
    %v1318 = vpop.f32.mrb[0].mxu0
    %v1319 = vpop.f32.mrb[0].mxu0
    %1320 = vdwg.mxu0
    %v1321 = vld [vmem:[%s0] sm:$0xff]
    %v1322 = vld [vmem:[%s0 + $0x8] sm:$0xff]
    %v1323 = vld [vmem:[%s0 + $0x10] sm:$0xff]
    %v1324 = vld [vmem:[%s0 + $0x18] sm:$0xff]
    %1329 = vrot.lane.b32.xlu0 %v1321, 109
    %v1330 = vpop.permute.xlu0 %1329
    %1331 = vrot.lane.b32.xlu0 %v1322, 109
    %v1332 = vpop.permute.xlu0 %1331
    %1333 = vrot.lane.b32.xlu0 %v1323, 109
    %v1334 = vpop.permute.xlu0 %1333
    %1335 = vrot.lane.b32.xlu0 %v1324, 109
    %v1336 = vpop.permute.xlu0 %1335
    %vm1337 = vcmask 891904
    %v1338 = vsel %vm1337, %v1330, %v1332
    %v1339 = vsel %vm1337, %v1332, %v1334
    %v1340 = vsel %vm1337, %v1334, %v1336
    %v1344 = vadd.f32 %v1233, %v1338
    %v1345 = vadd.f32 %v1235, %v1339
    %v1346 = vadd.f32 %v1274, %v1340
    %v1349 = vcombine.low %v1344, %v1345
    %1351 = vst [vmem:[#allocation7] sm:$0xff] %v1349
    %1352 = vst [vmem:[#allocation7 + $0x8] sm:$0xf] %v1346
    %v1353 = vld [vmem:[%s176] sm:$0xff]
    %v1354 = vld [vmem:[%s176 + $0x8] sm:$0xff]
    %v1355 = vld [vmem:[%s176 + $0x10] sm:$0xff]
    %v1356 = vld [vmem:[%s176 + $0x18] sm:$0xff]
    %1361 = vrot.lane.b32.xlu0 %v1353, 109
    %v1362 = vpop.permute.xlu0 %1361
    %1363 = vrot.lane.b32.xlu0 %v1354, 109
    %v1364 = vpop.permute.xlu0 %1363
    %1365 = vrot.lane.b32.xlu0 %v1355, 109
    %v1366 = vpop.permute.xlu0 %1365
    %1367 = vrot.lane.b32.xlu0 %v1356, 109
    %v1368 = vpop.permute.xlu0 %1367
    %v1369 = vsel %vm1337, %v1362, %v1364
    %v1370 = vsel %vm1337, %v1364, %v1366
    %v1371 = vsel %vm1337, %v1366, %v1368
    %v1375 = vadd.f32 %v1276, %v1369
    %v1376 = vadd.f32 %v1315, %v1370
    %v1377 = vadd.f32 %v1317, %v1371
    %v1380 = vcombine.low %v1375, %v1376
    %s1382 = scalar_lea.vmem [#allocation7], 12
    %1383 = vst [vmem:[%s1382] sm:$0xff] %v1380
    %1384 = vst [vmem:[%s1382 + $0x8] sm:$0xf] %v1377
    // Predicated region
    $region34: #{tpu_custom_call.1} parent=1 // pred_check
      _
    $region35: #{tpu_custom_call.1} parent=1 // pred_check_branch
      %1386 = sbr.rel (0) target = $region37
    $region36: #{tpu_custom_call.1} parent=1 // pred_region
      %s1388 = ssub.s32 384, 384
      %1389 = vsyncadd [#allocation6], %s1388
      %s1390 = sshll.u32 [#allocation7], 4
      %s1391 = int_to_ptr.vmem [resolvable:$true] %s1390
      %1396 = dma.vmem_to_hbm [thread:$0]  %s1391, 384, %s7, [#allocation6], 192, 192, 12
    $region37: #{tpu_custom_call.1} parent=1 // pred_fallthru
      _
    // Predicated region
    $region38: #{tpu_custom_call.1} parent=1 // pred_check
      _
    $region39: #{tpu_custom_call.1} parent=1 // pred_check_branch
      %1398 = sbr.rel (0) target = $region41
    $region40: #{tpu_custom_call.1} parent=1 // pred_region
      %1399 = dma.done [#allocation6], 384
    $region41: #{tpu_custom_call.1} parent=1 // pred_fallthru
      _
    %1400 = vsyncpa [#allocation5], 1
    %1401 = vsyncpa [#allocation6], 1

</llo_original>
